<compile_context>
chip_gen: v6e
topology: v6e:2x2x1
jax: 0.10.0
libtpu: 0.0.40
codegen_flags: <defaults>
</compile_context>

<pallas_src>
import functools

import jax
import jax.numpy as jnp
from jax.experimental import pallas as pl
from jax.experimental.pallas import tpu as pltpu

FEAT = 2048       # rep dimension produced by the (frozen) encoder
OUT_DIM = 10      # classifier output_dim
OUT_PAD = 128     # lane-dense padded classifier width (multiple of 128)


def simclr_kernel(x_ref, w_enc_ref, b_enc_ref, w_cls_ref, b_cls_ref,
                  out_ref, rep_ref, *, inv_hw):
    # x_ref:     [TB, C, H*W]      bf16 (pipelined batch tile)
    # w_enc_ref: [C, FEAT]         bf16 (frozen encoder projection, grid-invariant)
    # b_enc_ref: [1, FEAT]         f32
    # w_cls_ref: [FEAT, OUT_PAD]   f32  (zero-padded to 128 lanes)
    # b_cls_ref: [1, OUT_PAD]      f32
    # out_ref:   [TB, OUT_PAD]     f32  (lane-dense store; sliced outside)
    # rep_ref:   [TB, FEAT]        f32
    # Global average pool: cross-lane sum (XLU) with f32 accumulation, then one
    # scalar scale by 1/(H*W) hoisted as a compile-time constant.
    pooled = jnp.sum(x_ref[...], axis=-1, dtype=jnp.float32) * inv_hw     # [TB, C]
    # Frozen encoder: bf16 operands into the MXU, f32 accumulation.
    rep = jnp.dot(pooled.astype(jnp.bfloat16), w_enc_ref[...],
                  preferred_element_type=jnp.float32)                     # [TB, FEAT]
    rep = jnp.maximum(rep + b_enc_ref[...], 0.0)
    rep_ref[...] = rep
    # Classification head (trainable part) kept in f32.
    out = jnp.dot(rep, w_cls_ref[...], preferred_element_type=jnp.float32)
    out_ref[...] = out + b_cls_ref[...]


def _choose_batch_tile(B, row_bytes, budget=16 * 1024 * 1024):
    """Largest multiple-of-8 tile dividing B whose double-buffered x tiles fit
    in `budget` bytes (keeps v7x's 64 MiB VMEM comfortable); fall back to the
    whole batch for small / odd B."""
    for tb in (256, 128, 64, 32, 16, 8):
        if B % tb == 0 and 2 * tb * row_bytes <= budget:
            return tb
    return B


def simclr_forward(x, w_enc, b_enc, w_cls, b_cls):
    """x: [B, C, H, W] float32 (NCHW). Returns (out [B, OUT_DIM], rep [B, FEAT])."""
    B, C, H, W = x.shape
    HW = H * W

    # bf16 input / frozen encoder weight: halves HBM traffic (memory-bound
    # kernel on every TPU generation); one-time cast since the encoder is frozen.
    x_flat = x.reshape(B, C, HW).astype(jnp.bfloat16)
    w_enc_b = w_enc.astype(jnp.bfloat16)
    b_enc_f = b_enc.astype(jnp.float32)

    # Lane-dense classifier: pad OUT_DIM -> OUT_PAD so the output store is an
    # unmasked full-lane vst; sliced back to OUT_DIM below.
    w_cls_p = jnp.zeros((FEAT, OUT_PAD), jnp.float32).at[:, :OUT_DIM].set(w_cls)
    b_cls_p = jnp.zeros((1, OUT_PAD), jnp.float32).at[:, :OUT_DIM].set(b_cls)

    row_bytes = C * HW * 2                      # one batch row of bf16 x
    tb = _choose_batch_tile(B, row_bytes)
    grid = (B // tb,)

    bytes_accessed = (B * C * HW * 2 + C * FEAT * 2 + FEAT * 4
                      + FEAT * OUT_PAD * 4 + OUT_PAD * 4
                      + B * FEAT * 4 + B * OUT_PAD * 4)
    flops = B * C * HW + 2 * B * C * FEAT + 2 * B * FEAT * OUT_PAD

    out_p, rep = pl.pallas_call(
        functools.partial(simclr_kernel, inv_hw=1.0 / HW),
        out_shape=(jax.ShapeDtypeStruct((B, OUT_PAD), jnp.float32),
                   jax.ShapeDtypeStruct((B, FEAT), jnp.float32)),
        grid=grid,
        in_specs=[
            pl.BlockSpec((tb, C, HW), lambda i: (i, 0, 0)),   # pipelined x tile
            pl.BlockSpec((C, FEAT), lambda i: (0, 0)),        # grid-invariant weights
            pl.BlockSpec((1, FEAT), lambda i: (0, 0)),
            pl.BlockSpec((FEAT, OUT_PAD), lambda i: (0, 0)),
            pl.BlockSpec((1, OUT_PAD), lambda i: (0, 0)),
        ],
        out_specs=(pl.BlockSpec((tb, OUT_PAD), lambda i: (i, 0)),
                   pl.BlockSpec((tb, FEAT), lambda i: (i, 0))),
        compiler_params=pltpu.CompilerParams(
            dimension_semantics=("parallel",),                # megacore / v7x dual-TC
            vmem_limit_bytes=48 * 1024 * 1024),
        cost_estimate=pl.CostEstimate(flops=flops, transcendentals=0,
                                      bytes_accessed=bytes_accessed),
    )(x_flat, w_enc_b, b_enc_f, w_cls_p, b_cls_p)

    return out_p[:, :OUT_DIM], rep


def make_params(key, in_channels):
    k1, k2, k3, k4 = jax.random.split(key, 4)
    # Frozen encoder stand-in params.
    w_enc = jax.random.normal(k1, (in_channels, FEAT), jnp.float32) * 0.02
    b_enc = jax.random.normal(k2, (1, FEAT), jnp.float32) * 0.02
    # classification_layer = nn.Linear(2048, output_dim); stored as [in, out].
    w_cls = jax.random.normal(k3, (FEAT, OUT_DIM), jnp.float32) * (1.0 / FEAT) ** 0.5
    b_cls = jax.random.normal(k4, (1, OUT_DIM), jnp.float32) * 0.02
    return w_enc, b_enc, w_cls, b_cls


if __name__ == "__main__":
    key = jax.random.PRNGKey(0)
    kx, kp = jax.random.split(key)
    B, C, H, W = 2, 4, 16, 16
    x = jax.random.normal(kx, (B, C, H, W), jnp.float32)
    w_enc, b_enc, w_cls, b_cls = make_params(kp, C)

    out, rep = simclr_forward(x, w_enc, b_enc, w_cls, b_cls)
    jax.block_until_ready((out, rep))

    # Pure-JAX f32 reference (kernel uses bf16 x / w_enc -> looser tolerance).
    pooled_r = x.reshape(B, C, H * W).mean(-1)
    rep_r = jnp.maximum(pooled_r @ w_enc + b_enc, 0.0)
    out_r = rep_r @ w_cls + b_cls
    assert out.shape == (B, OUT_DIM) and rep.shape == (B, FEAT)
    assert jnp.allclose(rep, rep_r, atol=1e-2, rtol=1e-2), float(jnp.max(jnp.abs(rep - rep_r)))
    assert jnp.allclose(out, out_r, atol=1e-2, rtol=1e-2), float(jnp.max(jnp.abs(out - out_r)))

    print("KERNEL_OK")
</pallas_src>

<mosaic_0001>
module attributes {stable_mosaic.version = 11 : i64} {
  func.func @simclr_kernel(%arg0: i32, %arg1: memref<2x4x256xbf16, #tpu.memory_space<vmem>>, %arg2: memref<4x2048xbf16, #tpu.memory_space<vmem>>, %arg3: memref<1x2048xf32, #tpu.memory_space<vmem>>, %arg4: memref<2048x128xf32, #tpu.memory_space<vmem>>, %arg5: memref<1x128xf32, #tpu.memory_space<vmem>>, %arg6: memref<2x128xf32, #tpu.memory_space<vmem>>, %arg7: memref<2x2048xf32, #tpu.memory_space<vmem>>) attributes {dimension_semantics = [#tpu.dimension_semantics<parallel>], iteration_bounds = array<i64: 1>, scalar_prefetch = 0 : i64, scratch_operands = 0 : i64, tpu.core_type = #tpu.core_type<tc>, window_params = [{transform_indices = @transform_0, window_bounds = array<i64: 2, 4, 256>}, {pipeline_mode = #tpu.pipeline_mode<synchronous>, transform_indices = @transform_1, window_bounds = array<i64: 4, 2048>}, {pipeline_mode = #tpu.pipeline_mode<synchronous>, transform_indices = @transform_2, window_bounds = array<i64: 1, 2048>}, {pipeline_mode = #tpu.pipeline_mode<synchronous>, transform_indices = @transform_3, window_bounds = array<i64: 2048, 128>}, {pipeline_mode = #tpu.pipeline_mode<synchronous>, transform_indices = @transform_4, window_bounds = array<i64: 1, 128>}, {transform_indices = @transform_5, window_bounds = array<i64: 2, 128>}, {transform_indices = @transform_6, window_bounds = array<i64: 2, 2048>}]} {
    %c0 = arith.constant 0 : index
    %c0_0 = arith.constant 0 : index
    %c0_1 = arith.constant 0 : index
    %0 = vector.load %arg1[%c0, %c0_0, %c0_1] : memref<2x4x256xbf16, #tpu.memory_space<vmem>>, vector<2x4x256xbf16>
    %1 = arith.extf %0 : vector<2x4x256xbf16> to vector<2x4x256xf32>
    %cst = arith.constant dense<0.000000e+00> : vector<2x4xf32>
    %2 = vector.multi_reduction <add>, %1, %cst [2] : vector<2x4x256xf32> to vector<2x4xf32>
    %cst_2 = arith.constant 3.906250e-03 : f32
    %3 = vector.broadcast %cst_2 : f32 to vector<2x4xf32>
    %4 = arith.mulf %2, %3 : vector<2x4xf32>
    %5 = arith.truncf %4 : vector<2x4xf32> to vector<2x4xbf16>
    %c0_3 = arith.constant 0 : index
    %c0_4 = arith.constant 0 : index
    %6 = vector.load %arg2[%c0_3, %c0_4] : memref<4x2048xbf16, #tpu.memory_space<vmem>>, vector<4x2048xbf16>
    %cst_5 = arith.constant dense<0.000000e+00> : vector<2x2048xf32>
    %7 = tpu.matmul %5, %6, %cst_5 {dimension_numbers = #tpu.dot_dimension_numbers<[1], [0], [0], [1], [0, 0, 1, 1], [], []>} : vector<2x4xbf16>, vector<4x2048xbf16>, vector<2x2048xf32> -> vector<2x2048xf32>
    %c0_6 = arith.constant 0 : index
    %c0_7 = arith.constant 0 : index
    %8 = vector.load %arg3[%c0_6, %c0_7] : memref<1x2048xf32, #tpu.memory_space<vmem>>, vector<1x2048xf32>
    %9 = vector.broadcast %8 : vector<1x2048xf32> to vector<2x2048xf32>
    %10 = arith.addf %7, %9 : vector<2x2048xf32>
    %cst_8 = arith.constant 0.000000e+00 : f32
    %11 = vector.broadcast %cst_8 : f32 to vector<2x2048xf32>
    %12 = arith.maximumf %10, %11 : vector<2x2048xf32>
    %c0_9 = arith.constant 0 : index
    %c0_10 = arith.constant 0 : index
    %13 = vector.load %arg7[%c0_9, %c0_10] : memref<2x2048xf32, #tpu.memory_space<vmem>>, vector<2x2048xf32>
    tpu.vector_store %arg7[%c0_9, %c0_10], %12 {strides = array<i32>} : memref<2x2048xf32, #tpu.memory_space<vmem>>, vector<2x2048xf32>,
    %c0_11 = arith.constant 0 : index
    %c0_12 = arith.constant 0 : index
    %14 = vector.load %arg4[%c0_11, %c0_12] : memref<2048x128xf32, #tpu.memory_space<vmem>>, vector<2048x128xf32>
    %cst_13 = arith.constant dense<0.000000e+00> : vector<2x128xf32>
    %15 = tpu.matmul %12, %14, %cst_13 {dimension_numbers = #tpu.dot_dimension_numbers<[1], [0], [0], [1], [0, 0, 1, 1], [], []>} : vector<2x2048xf32>, vector<2048x128xf32>, vector<2x128xf32> -> vector<2x128xf32>
    %c0_14 = arith.constant 0 : index
    %c0_15 = arith.constant 0 : index
    %16 = vector.load %arg5[%c0_14, %c0_15] : memref<1x128xf32, #tpu.memory_space<vmem>>, vector<1x128xf32>
    %17 = vector.broadcast %16 : vector<1x128xf32> to vector<2x128xf32>
    %18 = arith.addf %15, %17 : vector<2x128xf32>
    %c0_16 = arith.constant 0 : index
    %c0_17 = arith.constant 0 : index
    %19 = vector.load %arg6[%c0_16, %c0_17] : memref<2x128xf32, #tpu.memory_space<vmem>>, vector<2x128xf32>
    tpu.vector_store %arg6[%c0_16, %c0_17], %18 {strides = array<i32>} : memref<2x128xf32, #tpu.memory_space<vmem>>, vector<2x128xf32>,
    return
  }
  func.func @transform_0(%arg0: i32) -> (i32, i32, i32) {
    %c0_i32 = arith.constant 0 : i32
    %c0_i32_0 = arith.constant 0 : i32
    %c0_i32_1 = arith.constant 0 : i32
    return %arg0, %c0_i32, %c0_i32_0 : i32, i32, i32
  }
  func.func @transform_1(%arg0: i32) -> (i32, i32) {
    %c0_i32 = arith.constant 0 : i32
    %c0_i32_0 = arith.constant 0 : i32
    %c0_i32_1 = arith.constant 0 : i32
    return %c0_i32, %c0_i32_0 : i32, i32
  }
  func.func @transform_2(%arg0: i32) -> (i32, i32) {
    %c0_i32 = arith.constant 0 : i32
    %c0_i32_0 = arith.constant 0 : i32
    %c0_i32_1 = arith.constant 0 : i32
    return %c0_i32, %c0_i32_0 : i32, i32
  }
  func.func @transform_3(%arg0: i32) -> (i32, i32) {
    %c0_i32 = arith.constant 0 : i32
    %c0_i32_0 = arith.constant 0 : i32
    %c0_i32_1 = arith.constant 0 : i32
    return %c0_i32, %c0_i32_0 : i32, i32
  }
  func.func @transform_4(%arg0: i32) -> (i32, i32) {
    %c0_i32 = arith.constant 0 : i32
    %c0_i32_0 = arith.constant 0 : i32
    %c0_i32_1 = arith.constant 0 : i32
    return %c0_i32, %c0_i32_0 : i32, i32
  }
  func.func @transform_5(%arg0: i32) -> (i32, i32) {
    %c0_i32 = arith.constant 0 : i32
    %c0_i32_0 = arith.constant 0 : i32
    return %arg0, %c0_i32 : i32, i32
  }
  func.func @transform_6(%arg0: i32) -> (i32, i32) {
    %c0_i32 = arith.constant 0 : i32
    %c0_i32_0 = arith.constant 0 : i32
    return %arg0, %c0_i32 : i32, i32
  }
}

</mosaic_0001>

<llo_original>
// kernel: tpu_custom_call.1
$region0: #{tpu_custom_call.1}
  #allocation0 [shape = 'u32[]', space=smem, size = 0x4, offset = 0x4, fixed_abs, tag = 'smem constant byte address 0x4 - core index']
  #allocation1 [shape = 'u32[144,128]{1,0:T(1,128)}', space=vmem, size = 0x12000, scoped, tag = 'internal scratch']
  %s0 = inlined_call_operand.hbm [shape: bf16[2,4,256], index: 0, kind: input, shape index: {}]
  %s1 = inlined_call_operand.hbm [shape: bf16[4,2048], index: 1, kind: input, shape index: {}]
  %s2 = inlined_call_operand.hbm [shape: f32[1,2048], index: 2, kind: input, shape index: {}]
  %s3 = inlined_call_operand.hbm [shape: f32[2048,128], index: 3, kind: input, shape index: {}]
  %s4 = inlined_call_operand.vmem [shape: f32[1,128], index: 4, kind: input, shape index: {}]
  %s5 = inlined_call_operand.hbm [shape: f32[2,128], index: 5, kind: output, shape index: {0}]
  %s6 = inlined_call_operand.hbm [shape: f32[2,2048], index: 6, kind: output, shape index: {1}]
  %7 = xla_tuple %s5, %s6
  %s8 = sld [smem:[#allocation0]]
  $region54: #{tpu_custom_call.1} parent=0
    _
  %s10 = ssub.s32 1, %s8
  %s11 = scalar_select 0, %s10, %s8
  $region1: #{tpu_custom_call.1} parent=0
    #allocation2 [shape = 'u8[4096]{0}', space=vmem, size = 0x1000, scoped, tag = 'input window, operand 0, single buffered']
    #allocation3 [shape = 's32[1]{0}', space=sflag, size = 0x4, scoped, tag = 'scoped memory for tpu_custom_call.1']
    #allocation4 [shape = 's32[1]{0}', space=sflag, size = 0x4, scoped, tag = 'scoped memory for tpu_custom_call.1']
    #allocation5 [shape = 'u8[16384]{0}', space=vmem, size = 0x4000, scoped, tag = 'input window, operand 1, single buffered']
    #allocation6 [shape = 's32[1]{0}', space=sflag, size = 0x4, scoped, tag = 'scoped memory for tpu_custom_call.1']
    #allocation7 [shape = 'u8[8192]{0}', space=vmem, size = 0x2000, scoped, tag = 'input window, operand 2, single buffered']
    #allocation8 [shape = 'u8[1048576]{0}', space=vmem, size = 0x100000, scoped, tag = 'input window, operand 3, single buffered']
    #allocation9 [shape = 's32[1]{0}', space=sflag, size = 0x4, scoped, tag = 'scoped memory for tpu_custom_call.1']
    #allocation10 [shape = 'u8[1024]{0}', space=vmem, size = 0x400, scoped, tag = 'output window, operand 0, single buffered']
    #allocation11 [shape = 'u8[16384]{0}', space=vmem, size = 0x4000, scoped, tag = 'output window, operand 1, single buffered']
    #allocation12 [shape = 's32[1]{0}', space=sflag, size = 0x4, scoped, tag = 'scoped memory for tpu_custom_call.1']
    %12 = vsyncpa [#allocation3], 0
    %13 = vsyncpa [#allocation6], 0
    %14 = vsyncpa [#allocation9], 0
    %15 = vsyncpa [#allocation4], 0
    %16 = vsyncpa [#allocation12], 0
    // Predicated region
    $region2: #{tpu_custom_call.1} parent=1 // pred_check
      _
    $region3: #{tpu_custom_call.1} parent=1 // pred_check_branch
      %18 = sbr.rel (0) target = $region5
    $region4: #{tpu_custom_call.1} parent=1 // pred_region
      %s20 = ssub.s32 128, 128
      %21 = vsyncadd [#allocation3], %s20
      %s22 = sshll.u32 [#allocation2], 4
      %s23 = int_to_ptr.vmem [resolvable:$true] %s22
      %28 = dma.hbm_to_vmem [thread:$0]  %s0, 128, %s23, [#allocation3], 64, 64, 4
    $region5: #{tpu_custom_call.1} parent=1 // pred_fallthru
      _
    // Predicated region
    $region6: #{tpu_custom_call.1} parent=1 // pred_check
      _
    $region7: #{tpu_custom_call.1} parent=1 // pred_check_branch
      %30 = sbr.rel (0) target = $region9
    $region8: #{tpu_custom_call.1} parent=1 // pred_region
      %s32 = ssub.s32 512, 512
      %33 = vsyncadd [#allocation6], %s32
      %s35 = sshll.u32 [#allocation5], 4
      %s36 = int_to_ptr.vmem [resolvable:$true] %s35
      %38 = dma.hbm_to_vmem [thread:$0]  %s1, 512, %s36, [#allocation6]
    $region9: #{tpu_custom_call.1} parent=1 // pred_fallthru
      _
    // Predicated region
    $region10: #{tpu_custom_call.1} parent=1 // pred_check
      _
    $region11: #{tpu_custom_call.1} parent=1 // pred_check_branch
      %40 = sbr.rel (0) target = $region13
    $region12: #{tpu_custom_call.1} parent=1 // pred_region
      %s42 = ssub.s32 256, 256
      %43 = vsyncadd [#allocation6], %s42
      %s45 = sshll.u32 [#allocation7], 4
      %s46 = int_to_ptr.vmem [resolvable:$true] %s45
      %48 = dma.hbm_to_vmem [thread:$0]  %s2, 256, %s46, [#allocation6]
    $region13: #{tpu_custom_call.1} parent=1 // pred_fallthru
      _
    // Predicated region
    $region14: #{tpu_custom_call.1} parent=1 // pred_check
      _
    $region15: #{tpu_custom_call.1} parent=1 // pred_check_branch
      %50 = sbr.rel (0) target = $region17
    $region16: #{tpu_custom_call.1} parent=1 // pred_region
      %s52 = ssub.s32 32768, 32768
      %53 = vsyncadd [#allocation9], %s52
      %s54 = sshll.u32 [#allocation8], 4
      %s55 = int_to_ptr.vmem [resolvable:$true] %s54
      %60 = dma.hbm_to_vmem [thread:$0]  %s3, 32768, %s55, [#allocation9], 128, 128, 8
    $region17: #{tpu_custom_call.1} parent=1 // pred_fallthru
      _
    // Predicated region
    $region18: #{tpu_custom_call.1} parent=1 // pred_check
      _
    $region19: #{tpu_custom_call.1} parent=1 // pred_check_branch
      %62 = sbr.rel (0) target = $region21
    $region20: #{tpu_custom_call.1} parent=1 // pred_region
      _
    $region21: #{tpu_custom_call.1} parent=1 // pred_fallthru
      _
    // Predicated region
    $region22: #{tpu_custom_call.1} parent=1 // pred_check
      _
    $region23: #{tpu_custom_call.1} parent=1 // pred_check_branch
      %64 = sbr.rel (0) target = $region25
    $region24: #{tpu_custom_call.1} parent=1 // pred_region
      %65 = dma.done [#allocation3], 128
    $region25: #{tpu_custom_call.1} parent=1 // pred_fallthru
      _
    // Predicated region
    $region26: #{tpu_custom_call.1} parent=1 // pred_check
      _
    $region27: #{tpu_custom_call.1} parent=1 // pred_check_branch
      %67 = sbr.rel (0) target = $region29
    $region28: #{tpu_custom_call.1} parent=1 // pred_region
      %68 = dma.done [#allocation6], 512
    $region29: #{tpu_custom_call.1} parent=1 // pred_fallthru
      _
    // Predicated region
    $region30: #{tpu_custom_call.1} parent=1 // pred_check
      _
    $region31: #{tpu_custom_call.1} parent=1 // pred_check_branch
      %70 = sbr.rel (0) target = $region33
    $region32: #{tpu_custom_call.1} parent=1 // pred_region
      %71 = dma.done [#allocation6], 256
    $region33: #{tpu_custom_call.1} parent=1 // pred_fallthru
      _
    // Predicated region
    $region34: #{tpu_custom_call.1} parent=1 // pred_check
      _
    $region35: #{tpu_custom_call.1} parent=1 // pred_check_branch
      %73 = sbr.rel (0) target = $region37
    $region36: #{tpu_custom_call.1} parent=1 // pred_region
      %74 = dma.done [#allocation9], 32768
    $region37: #{tpu_custom_call.1} parent=1 // pred_fallthru
      _
    %v76 = vld [vmem:[#allocation2] sm:$0xf]
    %v77 = vld [vmem:[#allocation2 + $0x4] sm:$0xf]
    %v78 = vunpack.c.l.bf16 %v76
    %v79 = vunpack.c.l.bf16 %v77
    %v82 = vcombine.high %v78, %v78
    %v83 = vcombine.high %v79, %v79
    %vm86 = vcmask 1043456
    %v87 = vsel %vm86, %v78, 0.0
    %v88 = vsel %vm86, %v82, 0.0
    %v89 = vadd.f32 %v87, %v88
    %90 = vadd.xlane.f32.xlu0 %v89
    %v91 = vpop.xlane.xlu0 %90
    %v92 = vsel %vm86, %v79, 0.0
    %v93 = vsel %vm86, %v83, 0.0
    %v94 = vadd.f32 %v92, %v93
    %95 = vadd.xlane.f32.xlu0 %v94
    %v96 = vpop.xlane.xlu0 %95
    %v97 = vmul.f32 %v91, 0.00390625
    %v98 = vmul.f32 %v96, 0.00390625
    %v99 = vpack.c.bf16 %v97, %v97
    %v100 = vpack.c.bf16 %v98, %v98
    %v101 = vld [vmem:[#allocation5] sm:$0xff]
    %v102 = vld [vmem:[#allocation5 + $0x8] sm:$0xff]
    %v103 = vld [vmem:[#allocation5 + $0x10] sm:$0xff]
    %v104 = vld [vmem:[#allocation5 + $0x18] sm:$0xff]
    %v105 = vld [vmem:[#allocation7] sm:$0xff]
    %v106 = vld [vmem:[#allocation7 + $0x8] sm:$0xff]
    %v109 = vlaneseq
    %v110 = vshrl.u32 %v109, 7
    %v111 = vsub.s32 0, %v110
    %v112 = vrot.slane %v105, %v111
    %v113 = vlaneseq
    %v114 = vshrl.u32 %v113, 7
    %v115 = vsub.s32 1, %v114
    %v116 = vrot.slane %v105, %v115
    %v117 = vlaneseq
    %v118 = vshrl.u32 %v117, 7
    %v119 = vsub.s32 2, %v118
    %v120 = vrot.slane %v105, %v119
    %v121 = vlaneseq
    %v122 = vshrl.u32 %v121, 7
    %v123 = vsub.s32 3, %v122
    %v124 = vrot.slane %v105, %v123
    %v125 = vlaneseq
    %v126 = vshrl.u32 %v125, 7
    %v127 = vsub.s32 4, %v126
    %v128 = vrot.slane %v105, %v127
    %v129 = vlaneseq
    %v130 = vshrl.u32 %v129, 7
    %v131 = vsub.s32 5, %v130
    %v132 = vrot.slane %v105, %v131
    %v133 = vlaneseq
    %v134 = vshrl.u32 %v133, 7
    %v135 = vsub.s32 6, %v134
    %v136 = vrot.slane %v105, %v135
    %v137 = vlaneseq
    %v138 = vshrl.u32 %v137, 7
    %v139 = vsub.s32 7, %v138
    %v140 = vrot.slane %v105, %v139
    %v141 = vlaneseq
    %v142 = vshrl.u32 %v141, 7
    %v143 = vsub.s32 0, %v142
    %v144 = vrot.slane %v106, %v143
    %v145 = vlaneseq
    %v146 = vshrl.u32 %v145, 7
    %v147 = vsub.s32 1, %v146
    %v148 = vrot.slane %v106, %v147
    %v149 = vlaneseq
    %v150 = vshrl.u32 %v149, 7
    %v151 = vsub.s32 2, %v150
    %v152 = vrot.slane %v106, %v151
    %v153 = vlaneseq
    %v154 = vshrl.u32 %v153, 7
    %v155 = vsub.s32 3, %v154
    %v156 = vrot.slane %v106, %v155
    %v157 = vlaneseq
    %v158 = vshrl.u32 %v157, 7
    %v159 = vsub.s32 4, %v158
    %v160 = vrot.slane %v106, %v159
    %v161 = vlaneseq
    %v162 = vshrl.u32 %v161, 7
    %v163 = vsub.s32 5, %v162
    %v164 = vrot.slane %v106, %v163
    %v165 = vlaneseq
    %v166 = vshrl.u32 %v165, 7
    %v167 = vsub.s32 6, %v166
    %v168 = vrot.slane %v106, %v167
    %v169 = vlaneseq
    %v170 = vshrl.u32 %v169, 7
    %v171 = vsub.s32 7, %v170
    %v172 = vrot.slane %v106, %v171
    %v191 = vunpack.c.l.b16 %v99
    %v192 = vunpack.c.l.b16 %v100
    %v193 = vlaneseq
    %v194 = vand.u32 %v193, 127
    %v195 = vlaneseq
    %v196 = vshrl.u32 %v195, 7
    %v197 = vsub.s32 %v194, %v196
    %v198 = vrot.slane %v191, %v197
    %v199 = vlaneseq
    %v200 = vshrl.u32 %v199, 7
    %v201 = vsub.s32 %v194, %v200
    %v202 = vrot.slane %v192, %v201
    %vm203 = vcmask 1041409
    %v204 = vsel %vm203, %v202, %v198
    %v205 = vpack.c.b16 %v204, %v204
    %v210 = vcombine.high %v101, %v101
    %v212 = vunpack.c.l.s4 1983009808
    %v213 = vunpack.c.0.s8 %v212
    %v214 = vlaneseq
    %v215 = vshrl.u32 %v214, 7
    %v216 = vsub.s32 %v213, %v215
    %v217 = vrot.slane %v101, %v216
    %v219 = vunpack.c.l.s4 1983009808
    %v220 = vunpack.c.0.s8 %v219
    %v221 = vlaneseq
    %v222 = vshrl.u32 %v221, 7
    %v223 = vsub.s32 %v220, %v222
    %v224 = vrot.slane %v210, %v223
    %v225 = vcombine.high %v217, %v217
    %v226 = vcombine.high %v224, %v224
    %v227 = vcombine.high %v102, %v102
    %v229 = vunpack.c.l.s4 1983009808
    %v230 = vunpack.c.0.s8 %v229
    %v231 = vlaneseq
    %v232 = vshrl.u32 %v231, 7
    %v233 = vsub.s32 %v230, %v232
    %v234 = vrot.slane %v102, %v233
    %v236 = vunpack.c.l.s4 1983009808
    %v237 = vunpack.c.0.s8 %v236
    %v238 = vlaneseq
    %v239 = vshrl.u32 %v238, 7
    %v240 = vsub.s32 %v237, %v239
    %v241 = vrot.slane %v227, %v240
    %v242 = vcombine.high %v234, %v234
    %v243 = vcombine.high %v241, %v241
    %v244 = vcombine.high %v103, %v103
    %v246 = vunpack.c.l.s4 1983009808
    %v247 = vunpack.c.0.s8 %v246
    %v248 = vlaneseq
    %v249 = vshrl.u32 %v248, 7
    %v250 = vsub.s32 %v247, %v249
    %v251 = vrot.slane %v103, %v250
    %v253 = vunpack.c.l.s4 1983009808
    %v254 = vunpack.c.0.s8 %v253
    %v255 = vlaneseq
    %v256 = vshrl.u32 %v255, 7
    %v257 = vsub.s32 %v254, %v256
    %v258 = vrot.slane %v244, %v257
    %v259 = vcombine.high %v251, %v251
    %v260 = vcombine.high %v258, %v258
    %v261 = vcombine.high %v104, %v104
    %v263 = vunpack.c.l.s4 1983009808
    %v264 = vunpack.c.0.s8 %v263
    %v265 = vlaneseq
    %v266 = vshrl.u32 %v265, 7
    %v267 = vsub.s32 %v264, %v266
    %v268 = vrot.slane %v104, %v267
    %v270 = vunpack.c.l.s4 1983009808
    %v271 = vunpack.c.0.s8 %v270
    %v272 = vlaneseq
    %v273 = vshrl.u32 %v272, 7
    %v274 = vsub.s32 %v271, %v273
    %v275 = vrot.slane %v261, %v274
    %v276 = vcombine.high %v268, %v268
    %v277 = vcombine.high %v275, %v275
    %vm278 = vcmask 31744
    %v280 = vsel %vm278, %v205, 0
    %vm282 = vcmask 1041408
    %v284 = vsel %vm282, %v217, 0
    %v287 = vsel %vm282, %v225, 0
    %v290 = vsel %vm282, %v224, 0
    %v293 = vsel %vm282, %v226, 0
    %v296 = vsel %vm282, %v234, 0
    %v299 = vsel %vm282, %v242, 0
    %v302 = vsel %vm282, %v241, 0
    %v305 = vsel %vm282, %v243, 0
    %v308 = vsel %vm282, %v251, 0
    %v311 = vsel %vm282, %v259, 0
    %v314 = vsel %vm282, %v258, 0
    %v317 = vsel %vm282, %v260, 0
    %v320 = vsel %vm282, %v268, 0
    %v323 = vsel %vm282, %v276, 0
    %v326 = vsel %vm282, %v275, 0
    %v329 = vsel %vm282, %v277, 0
    %331 = vmatprep.subr.bf16.mxu0 0
    %332 = vmatpush1.bf16.msra.mxu0 0
    %333 = vmatprep.subr.bf16.mxu0 0
    %334 = vmatpush1.bf16.msra.mxu0 0
    %335 = vmatprep.subr.bf16.mxu0 0
    %336 = vmatpush1.bf16.msra.mxu0 0
    %337 = vmatprep.subr.bf16.mxu0 0
    %338 = vmatpush1.bf16.msra.mxu0 0
    %339 = vmatprep.subr.bf16.mxu0 0
    %340 = vmatpush1.bf16.msra.mxu0 0
    %341 = vmatprep.subr.bf16.mxu0 0
    %342 = vmatpush1.bf16.msra.mxu0 0
    %343 = vmatprep.subr.bf16.mxu0 0
    %344 = vmatpush1.bf16.msra.mxu0 0
    %345 = vmatprep.subr.bf16.mxu0 %v287
    %346 = vmatpush1.bf16.msra.mxu0 %v284
    %347 = vmatprep.subr.bf16.mxu0 0
    %348 = vmatpush2.bf16.msra.mxu0 0
    %349 = vmatprep.subr.bf16.mxu0 0
    %350 = vmatpush2.bf16.msra.mxu0 0
    %351 = vmatprep.subr.bf16.mxu0 0
    %352 = vmatpush2.bf16.msra.mxu0 0
    %353 = vmatprep.subr.bf16.mxu0 0
    %354 = vmatpush2.bf16.msra.mxu0 0
    %355 = vmatprep.subr.bf16.mxu0 0
    %356 = vmatpush2.bf16.msra.mxu0 0
    %357 = vmatprep.subr.bf16.mxu0 0
    %358 = vmatpush2.bf16.msra.mxu0 0
    %359 = vmatprep.subr.bf16.mxu0 0
    %360 = vmatpush2.bf16.msra.mxu0 0
    %361 = vmatprep.subr.bf16.mxu0 0
    %362 = vmatpush2.bf16.msra.mxu0 0
    %363 = vmatprep.mubr.bf16.mxu0 0
    %364 = vmatmul.mubr.bf16.gmra.mxu0 %v280
    %v365 = vpop.f32.mrf.mxu0
    %v366 = vadd.f32 %v112, %v365
    %v367 = vpop.f32.mrf.mxu0
    %v368 = vadd.f32 %v116, %v367
    %v369 = vpop.f32.mrf.mxu0
    %v370 = vpop.f32.mrf.mxu0
    %371 = vdwg.mxu0
    %372 = vmatprep.subr.bf16.mxu0 0
    %373 = vmatpush1.bf16.msra.mxu0 0
    %374 = vmatprep.subr.bf16.mxu0 0
    %375 = vmatpush1.bf16.msra.mxu0 0
    %376 = vmatprep.subr.bf16.mxu0 0
    %377 = vmatpush1.bf16.msra.mxu0 0
    %378 = vmatprep.subr.bf16.mxu0 0
    %379 = vmatpush1.bf16.msra.mxu0 0
    %380 = vmatprep.subr.bf16.mxu0 0
    %381 = vmatpush1.bf16.msra.mxu0 0
    %382 = vmatprep.subr.bf16.mxu0 0
    %383 = vmatpush1.bf16.msra.mxu0 0
    %384 = vmatprep.subr.bf16.mxu0 0
    %385 = vmatpush1.bf16.msra.mxu0 0
    %386 = vmatprep.subr.bf16.mxu0 %v293
    %387 = vmatpush1.bf16.msra.mxu0 %v290
    %388 = vmatprep.subr.bf16.mxu0 0
    %389 = vmatpush2.bf16.msra.mxu0 0
    %390 = vmatprep.subr.bf16.mxu0 0
    %391 = vmatpush2.bf16.msra.mxu0 0
    %392 = vmatprep.subr.bf16.mxu0 0
    %393 = vmatpush2.bf16.msra.mxu0 0
    %394 = vmatprep.subr.bf16.mxu0 0
    %395 = vmatpush2.bf16.msra.mxu0 0
    %396 = vmatprep.subr.bf16.mxu0 0
    %397 = vmatpush2.bf16.msra.mxu0 0
    %398 = vmatprep.subr.bf16.mxu0 0
    %399 = vmatpush2.bf16.msra.mxu0 0
    %400 = vmatprep.subr.bf16.mxu0 0
    %401 = vmatpush2.bf16.msra.mxu0 0
    %402 = vmatprep.subr.bf16.mxu0 0
    %403 = vmatpush2.bf16.msra.mxu0 0
    %404 = vmatprep.mubr.bf16.mxu0 0
    %405 = vmatmul.mubr.bf16.gmra.mxu0 %v280
    %v406 = vpop.f32.mrf.mxu0
    %v407 = vadd.f32 %v120, %v406
    %v408 = vpop.f32.mrf.mxu0
    %v409 = vadd.f32 %v124, %v408
    %v410 = vpop.f32.mrf.mxu0
    %v411 = vpop.f32.mrf.mxu0
    %412 = vdwg.mxu0
    %413 = vmatprep.subr.bf16.mxu0 0
    %414 = vmatpush1.bf16.msra.mxu0 0
    %415 = vmatprep.subr.bf16.mxu0 0
    %416 = vmatpush1.bf16.msra.mxu0 0
    %417 = vmatprep.subr.bf16.mxu0 0
    %418 = vmatpush1.bf16.msra.mxu0 0
    %419 = vmatprep.subr.bf16.mxu0 0
    %420 = vmatpush1.bf16.msra.mxu0 0
    %421 = vmatprep.subr.bf16.mxu0 0
    %422 = vmatpush1.bf16.msra.mxu0 0
    %423 = vmatprep.subr.bf16.mxu0 0
    %424 = vmatpush1.bf16.msra.mxu0 0
    %425 = vmatprep.subr.bf16.mxu0 0
    %426 = vmatpush1.bf16.msra.mxu0 0
    %427 = vmatprep.subr.bf16.mxu0 %v299
    %428 = vmatpush1.bf16.msra.mxu0 %v296
    %429 = vmatprep.subr.bf16.mxu0 0
    %430 = vmatpush2.bf16.msra.mxu0 0
    %431 = vmatprep.subr.bf16.mxu0 0
    %432 = vmatpush2.bf16.msra.mxu0 0
    %433 = vmatprep.subr.bf16.mxu0 0
    %434 = vmatpush2.bf16.msra.mxu0 0
    %435 = vmatprep.subr.bf16.mxu0 0
    %436 = vmatpush2.bf16.msra.mxu0 0
    %437 = vmatprep.subr.bf16.mxu0 0
    %438 = vmatpush2.bf16.msra.mxu0 0
    %439 = vmatprep.subr.bf16.mxu0 0
    %440 = vmatpush2.bf16.msra.mxu0 0
    %441 = vmatprep.subr.bf16.mxu0 0
    %442 = vmatpush2.bf16.msra.mxu0 0
    %443 = vmatprep.subr.bf16.mxu0 0
    %444 = vmatpush2.bf16.msra.mxu0 0
    %445 = vmatprep.mubr.bf16.mxu0 0
    %446 = vmatmul.mubr.bf16.gmra.mxu0 %v280
    %v447 = vpop.f32.mrf.mxu0
    %v448 = vadd.f32 %v128, %v447
    %v449 = vpop.f32.mrf.mxu0
    %v450 = vadd.f32 %v132, %v449
    %v451 = vpop.f32.mrf.mxu0
    %v452 = vpop.f32.mrf.mxu0
    %453 = vdwg.mxu0
    %454 = vmatprep.subr.bf16.mxu0 0
    %455 = vmatpush1.bf16.msra.mxu0 0
    %456 = vmatprep.subr.bf16.mxu0 0
    %457 = vmatpush1.bf16.msra.mxu0 0
    %458 = vmatprep.subr.bf16.mxu0 0
    %459 = vmatpush1.bf16.msra.mxu0 0
    %460 = vmatprep.subr.bf16.mxu0 0
    %461 = vmatpush1.bf16.msra.mxu0 0
    %462 = vmatprep.subr.bf16.mxu0 0
    %463 = vmatpush1.bf16.msra.mxu0 0
    %464 = vmatprep.subr.bf16.mxu0 0
    %465 = vmatpush1.bf16.msra.mxu0 0
    %466 = vmatprep.subr.bf16.mxu0 0
    %467 = vmatpush1.bf16.msra.mxu0 0
    %468 = vmatprep.subr.bf16.mxu0 %v305
    %469 = vmatpush1.bf16.msra.mxu0 %v302
    %470 = vmatprep.subr.bf16.mxu0 0
    %471 = vmatpush2.bf16.msra.mxu0 0
    %472 = vmatprep.subr.bf16.mxu0 0
    %473 = vmatpush2.bf16.msra.mxu0 0
    %474 = vmatprep.subr.bf16.mxu0 0
    %475 = vmatpush2.bf16.msra.mxu0 0
    %476 = vmatprep.subr.bf16.mxu0 0
    %477 = vmatpush2.bf16.msra.mxu0 0
    %478 = vmatprep.subr.bf16.mxu0 0
    %479 = vmatpush2.bf16.msra.mxu0 0
    %480 = vmatprep.subr.bf16.mxu0 0
    %481 = vmatpush2.bf16.msra.mxu0 0
    %482 = vmatprep.subr.bf16.mxu0 0
    %483 = vmatpush2.bf16.msra.mxu0 0
    %484 = vmatprep.subr.bf16.mxu0 0
    %485 = vmatpush2.bf16.msra.mxu0 0
    %486 = vmatprep.mubr.bf16.mxu0 0
    %487 = vmatmul.mubr.bf16.gmra.mxu0 %v280
    %v488 = vpop.f32.mrf.mxu0
    %v489 = vadd.f32 %v136, %v488
    %v490 = vpop.f32.mrf.mxu0
    %v491 = vadd.f32 %v140, %v490
    %v492 = vpop.f32.mrf.mxu0
    %v493 = vpop.f32.mrf.mxu0
    %494 = vdwg.mxu0
    %495 = vmatprep.subr.bf16.mxu0 0
    %496 = vmatpush1.bf16.msra.mxu0 0
    %497 = vmatprep.subr.bf16.mxu0 0
    %498 = vmatpush1.bf16.msra.mxu0 0
    %499 = vmatprep.subr.bf16.mxu0 0
    %500 = vmatpush1.bf16.msra.mxu0 0
    %501 = vmatprep.subr.bf16.mxu0 0
    %502 = vmatpush1.bf16.msra.mxu0 0
    %503 = vmatprep.subr.bf16.mxu0 0
    %504 = vmatpush1.bf16.msra.mxu0 0
    %505 = vmatprep.subr.bf16.mxu0 0
    %506 = vmatpush1.bf16.msra.mxu0 0
    %507 = vmatprep.subr.bf16.mxu0 0
    %508 = vmatpush1.bf16.msra.mxu0 0
    %509 = vmatprep.subr.bf16.mxu0 %v311
    %510 = vmatpush1.bf16.msra.mxu0 %v308
    %511 = vmatprep.subr.bf16.mxu0 0
    %512 = vmatpush2.bf16.msra.mxu0 0
    %513 = vmatprep.subr.bf16.mxu0 0
    %514 = vmatpush2.bf16.msra.mxu0 0
    %515 = vmatprep.subr.bf16.mxu0 0
    %516 = vmatpush2.bf16.msra.mxu0 0
    %517 = vmatprep.subr.bf16.mxu0 0
    %518 = vmatpush2.bf16.msra.mxu0 0
    %519 = vmatprep.subr.bf16.mxu0 0
    %520 = vmatpush2.bf16.msra.mxu0 0
    %521 = vmatprep.subr.bf16.mxu0 0
    %522 = vmatpush2.bf16.msra.mxu0 0
    %523 = vmatprep.subr.bf16.mxu0 0
    %524 = vmatpush2.bf16.msra.mxu0 0
    %525 = vmatprep.subr.bf16.mxu0 0
    %526 = vmatpush2.bf16.msra.mxu0 0
    %527 = vmatprep.mubr.bf16.mxu0 0
    %528 = vmatmul.mubr.bf16.gmra.mxu0 %v280
    %v529 = vpop.f32.mrf.mxu0
    %v530 = vadd.f32 %v144, %v529
    %v531 = vpop.f32.mrf.mxu0
    %v532 = vadd.f32 %v148, %v531
    %v533 = vpop.f32.mrf.mxu0
    %v534 = vpop.f32.mrf.mxu0
    %535 = vdwg.mxu0
    %536 = vmatprep.subr.bf16.mxu0 0
    %537 = vmatpush1.bf16.msra.mxu0 0
    %538 = vmatprep.subr.bf16.mxu0 0
    %539 = vmatpush1.bf16.msra.mxu0 0
    %540 = vmatprep.subr.bf16.mxu0 0
    %541 = vmatpush1.bf16.msra.mxu0 0
    %542 = vmatprep.subr.bf16.mxu0 0
    %543 = vmatpush1.bf16.msra.mxu0 0
    %544 = vmatprep.subr.bf16.mxu0 0
    %545 = vmatpush1.bf16.msra.mxu0 0
    %546 = vmatprep.subr.bf16.mxu0 0
    %547 = vmatpush1.bf16.msra.mxu0 0
    %548 = vmatprep.subr.bf16.mxu0 0
    %549 = vmatpush1.bf16.msra.mxu0 0
    %550 = vmatprep.subr.bf16.mxu0 %v317
    %551 = vmatpush1.bf16.msra.mxu0 %v314
    %552 = vmatprep.subr.bf16.mxu0 0
    %553 = vmatpush2.bf16.msra.mxu0 0
    %554 = vmatprep.subr.bf16.mxu0 0
    %555 = vmatpush2.bf16.msra.mxu0 0
    %556 = vmatprep.subr.bf16.mxu0 0
    %557 = vmatpush2.bf16.msra.mxu0 0
    %558 = vmatprep.subr.bf16.mxu0 0
    %559 = vmatpush2.bf16.msra.mxu0 0
    %560 = vmatprep.subr.bf16.mxu0 0
    %561 = vmatpush2.bf16.msra.mxu0 0
    %562 = vmatprep.subr.bf16.mxu0 0
    %563 = vmatpush2.bf16.msra.mxu0 0
    %564 = vmatprep.subr.bf16.mxu0 0
    %565 = vmatpush2.bf16.msra.mxu0 0
    %566 = vmatprep.subr.bf16.mxu0 0
    %567 = vmatpush2.bf16.msra.mxu0 0
    %568 = vmatprep.mubr.bf16.mxu0 0
    %569 = vmatmul.mubr.bf16.gmra.mxu0 %v280
    %v570 = vpop.f32.mrf.mxu0
    %v571 = vadd.f32 %v152, %v570
    %v572 = vpop.f32.mrf.mxu0
    %v573 = vadd.f32 %v156, %v572
    %v574 = vpop.f32.mrf.mxu0
    %v575 = vpop.f32.mrf.mxu0
    %576 = vdwg.mxu0
    %577 = vmatprep.subr.bf16.mxu0 0
    %578 = vmatpush1.bf16.msra.mxu0 0
    %579 = vmatprep.subr.bf16.mxu0 0
    %580 = vmatpush1.bf16.msra.mxu0 0
    %581 = vmatprep.subr.bf16.mxu0 0
    %582 = vmatpush1.bf16.msra.mxu0 0
    %583 = vmatprep.subr.bf16.mxu0 0
    %584 = vmatpush1.bf16.msra.mxu0 0
    %585 = vmatprep.subr.bf16.mxu0 0
    %586 = vmatpush1.bf16.msra.mxu0 0
    %587 = vmatprep.subr.bf16.mxu0 0
    %588 = vmatpush1.bf16.msra.mxu0 0
    %589 = vmatprep.subr.bf16.mxu0 0
    %590 = vmatpush1.bf16.msra.mxu0 0
    %591 = vmatprep.subr.bf16.mxu0 %v323
    %592 = vmatpush1.bf16.msra.mxu0 %v320
    %593 = vmatprep.subr.bf16.mxu0 0
    %594 = vmatpush2.bf16.msra.mxu0 0
    %595 = vmatprep.subr.bf16.mxu0 0
    %596 = vmatpush2.bf16.msra.mxu0 0
    %597 = vmatprep.subr.bf16.mxu0 0
    %598 = vmatpush2.bf16.msra.mxu0 0
    %599 = vmatprep.subr.bf16.mxu0 0
    %600 = vmatpush2.bf16.msra.mxu0 0
    %601 = vmatprep.subr.bf16.mxu0 0
    %602 = vmatpush2.bf16.msra.mxu0 0
    %603 = vmatprep.subr.bf16.mxu0 0
    %604 = vmatpush2.bf16.msra.mxu0 0
    %605 = vmatprep.subr.bf16.mxu0 0
    %606 = vmatpush2.bf16.msra.mxu0 0
    %607 = vmatprep.subr.bf16.mxu0 0
    %608 = vmatpush2.bf16.msra.mxu0 0
    %609 = vmatprep.mubr.bf16.mxu0 0
    %610 = vmatmul.mubr.bf16.gmra.mxu0 %v280
    %v611 = vpop.f32.mrf.mxu0
    %v612 = vadd.f32 %v160, %v611
    %v613 = vpop.f32.mrf.mxu0
    %v614 = vadd.f32 %v164, %v613
    %v615 = vpop.f32.mrf.mxu0
    %v616 = vpop.f32.mrf.mxu0
    %617 = vdwg.mxu0
    %618 = vmatprep.subr.bf16.mxu0 0
    %619 = vmatpush1.bf16.msra.mxu0 0
    %620 = vmatprep.subr.bf16.mxu0 0
    %621 = vmatpush1.bf16.msra.mxu0 0
    %622 = vmatprep.subr.bf16.mxu0 0
    %623 = vmatpush1.bf16.msra.mxu0 0
    %624 = vmatprep.subr.bf16.mxu0 0
    %625 = vmatpush1.bf16.msra.mxu0 0
    %626 = vmatprep.subr.bf16.mxu0 0
    %627 = vmatpush1.bf16.msra.mxu0 0
    %628 = vmatprep.subr.bf16.mxu0 0
    %629 = vmatpush1.bf16.msra.mxu0 0
    %630 = vmatprep.subr.bf16.mxu0 0
    %631 = vmatpush1.bf16.msra.mxu0 0
    %632 = vmatprep.subr.bf16.mxu0 %v329
    %633 = vmatpush1.bf16.msra.mxu0 %v326
    %634 = vmatprep.subr.bf16.mxu0 0
    %635 = vmatpush2.bf16.msra.mxu0 0
    %636 = vmatprep.subr.bf16.mxu0 0
    %637 = vmatpush2.bf16.msra.mxu0 0
    %638 = vmatprep.subr.bf16.mxu0 0
    %639 = vmatpush2.bf16.msra.mxu0 0
    %640 = vmatprep.subr.bf16.mxu0 0
    %641 = vmatpush2.bf16.msra.mxu0 0
    %642 = vmatprep.subr.bf16.mxu0 0
    %643 = vmatpush2.bf16.msra.mxu0 0
    %644 = vmatprep.subr.bf16.mxu0 0
    %645 = vmatpush2.bf16.msra.mxu0 0
    %646 = vmatprep.subr.bf16.mxu0 0
    %647 = vmatpush2.bf16.msra.mxu0 0
    %648 = vmatprep.subr.bf16.mxu0 0
    %649 = vmatpush2.bf16.msra.mxu0 0
    %650 = vmatprep.mubr.bf16.mxu0 0
    %651 = vmatmul.mubr.bf16.gmra.mxu0 %v280
    %v652 = vpop.f32.mrf.mxu0
    %v653 = vadd.f32 %v168, %v652
    %v654 = vpop.f32.mrf.mxu0
    %v655 = vadd.f32 %v172, %v654
    %v656 = vpop.f32.mrf.mxu0
    %v657 = vpop.f32.mrf.mxu0
    %658 = vdwg.mxu0
    %v659 = vmax.f32 %v366, 0.0
    %v660 = vmax.f32 %v368, 0.0
    %v661 = vmax.f32 %v407, 0.0
    %v662 = vmax.f32 %v409, 0.0
    %v663 = vmax.f32 %v448, 0.0
    %v664 = vmax.f32 %v450, 0.0
    %v665 = vmax.f32 %v489, 0.0
    %v666 = vmax.f32 %v491, 0.0
    %v667 = vmax.f32 %v530, 0.0
    %v668 = vmax.f32 %v532, 0.0
    %v669 = vmax.f32 %v571, 0.0
    %v670 = vmax.f32 %v573, 0.0
    %v671 = vmax.f32 %v612, 0.0
    %v672 = vmax.f32 %v614, 0.0
    %v673 = vmax.f32 %v653, 0.0
    %v674 = vmax.f32 %v655, 0.0
    %v691 = vcombine.low %v659, %v660
    %v692 = vcombine.low %v661, %v662
    %v694 = vunpack.c.l.s4 1983009808
    %v695 = vunpack.c.0.s8 %v694
    %v696 = vlaneseq
    %v697 = vshrl.u32 %v696, 7
    %v698 = vsub.s32 %v695, %v697
    %v699 = vrot.slane %v691, %v698
    %v701 = vunpack.c.l.s4 1983009808
    %v702 = vunpack.c.0.s8 %v701
    %v703 = vlaneseq
    %v704 = vshrl.u32 %v703, 7
    %v705 = vsub.s32 %v702, %v704
    %v706 = vrot.slane %v692, %v705
    %v707 = vcombine.low %v699, %v706
    %v708 = vcombine.low %v663, %v664
    %v709 = vcombine.low %v665, %v666
    %v711 = vunpack.c.l.s4 1983009808
    %v712 = vunpack.c.0.s8 %v711
    %v713 = vlaneseq
    %v714 = vshrl.u32 %v713, 7
    %v715 = vsub.s32 %v712, %v714
    %v716 = vrot.slane %v708, %v715
    %v718 = vunpack.c.l.s4 1983009808
    %v719 = vunpack.c.0.s8 %v718
    %v720 = vlaneseq
    %v721 = vshrl.u32 %v720, 7
    %v722 = vsub.s32 %v719, %v721
    %v723 = vrot.slane %v709, %v722
    %v724 = vcombine.low %v716, %v723
    %v725 = vcombine.low %v667, %v668
    %v726 = vcombine.low %v669, %v670
    %v728 = vunpack.c.l.s4 1983009808
    %v729 = vunpack.c.0.s8 %v728
    %v730 = vlaneseq
    %v731 = vshrl.u32 %v730, 7
    %v732 = vsub.s32 %v729, %v731
    %v733 = vrot.slane %v725, %v732
    %v735 = vunpack.c.l.s4 1983009808
    %v736 = vunpack.c.0.s8 %v735
    %v737 = vlaneseq
    %v738 = vshrl.u32 %v737, 7
    %v739 = vsub.s32 %v736, %v738
    %v740 = vrot.slane %v726, %v739
    %v741 = vcombine.low %v733, %v740
    %v742 = vcombine.low %v671, %v672
    %v743 = vcombine.low %v673, %v674
    %v745 = vunpack.c.l.s4 1983009808
    %v746 = vunpack.c.0.s8 %v745
    %v747 = vlaneseq
    %v748 = vshrl.u32 %v747, 7
    %v749 = vsub.s32 %v746, %v748
    %v750 = vrot.slane %v742, %v749
    %v752 = vunpack.c.l.s4 1983009808
    %v753 = vunpack.c.0.s8 %v752
    %v754 = vlaneseq
    %v755 = vshrl.u32 %v754, 7
    %v756 = vsub.s32 %v753, %v755
    %v757 = vrot.slane %v743, %v756
    %v758 = vcombine.low %v750, %v757
    %763 = vst [vmem:[#allocation11] sm:$0xff] %v707
    %764 = vst [vmem:[#allocation11 + $0x8] sm:$0xff] %v724
    %765 = vst [vmem:[#allocation11 + $0x10] sm:$0xff] %v741
    %766 = vst [vmem:[#allocation11 + $0x18] sm:$0xff] %v758
    %v767 = vld [vmem:[#allocation8] sm:$0xff]
    %v768 = vld [vmem:[#allocation8 + $0x8] sm:$0xff]
    %v769 = vld [vmem:[#allocation8 + $0x10] sm:$0xff]
    %v770 = vld [vmem:[#allocation8 + $0x18] sm:$0xff]
    %v771 = vld [vmem:[#allocation8 + $0x20] sm:$0xff]
    %v772 = vld [vmem:[#allocation8 + $0x28] sm:$0xff]
    %v773 = vld [vmem:[#allocation8 + $0x30] sm:$0xff]
    %v774 = vld [vmem:[#allocation8 + $0x38] sm:$0xff]
    %v775 = vld [vmem:[#allocation8 + $0x40] sm:$0xff]
    %v776 = vld [vmem:[#allocation8 + $0x48] sm:$0xff]
    %v777 = vld [vmem:[#allocation8 + $0x50] sm:$0xff]
    %v778 = vld [vmem:[#allocation8 + $0x58] sm:$0xff]
    %v779 = vld [vmem:[#allocation8 + $0x60] sm:$0xff]
    %v780 = vld [vmem:[#allocation8 + $0x68] sm:$0xff]
    %v781 = vld [vmem:[#allocation8 + $0x70] sm:$0xff]
    %v782 = vld [vmem:[#allocation8 + $0x78] sm:$0xff]
    %v783 = vld [vmem:[#allocation8 + $0x80] sm:$0xff]
    %v784 = vld [vmem:[#allocation8 + $0x88] sm:$0xff]
    %v785 = vld [vmem:[#allocation8 + $0x90] sm:$0xff]
    %v786 = vld [vmem:[#allocation8 + $0x98] sm:$0xff]
    %v787 = vld [vmem:[#allocation8 + $0xa0] sm:$0xff]
    %v788 = vld [vmem:[#allocation8 + $0xa8] sm:$0xff]
    %v789 = vld [vmem:[#allocation8 + $0xb0] sm:$0xff]
    %v790 = vld [vmem:[#allocation8 + $0xb8] sm:$0xff]
    %v791 = vld [vmem:[#allocation8 + $0xc0] sm:$0xff]
    %v792 = vld [vmem:[#allocation8 + $0xc8] sm:$0xff]
    %v793 = vld [vmem:[#allocation8 + $0xd0] sm:$0xff]
    %v794 = vld [vmem:[#allocation8 + $0xd8] sm:$0xff]
    %v795 = vld [vmem:[#allocation8 + $0xe0] sm:$0xff]
    %v796 = vld [vmem:[#allocation8 + $0xe8] sm:$0xff]
    %v797 = vld [vmem:[#allocation8 + $0xf0] sm:$0xff]
    %v798 = vld [vmem:[#allocation8 + $0xf8] sm:$0xff]
    %v799 = vld [vmem:[#allocation8 + $0x100] sm:$0xff]
    %v800 = vld [vmem:[#allocation8 + $0x108] sm:$0xff]
    %v801 = vld [vmem:[#allocation8 + $0x110] sm:$0xff]
    %v802 = vld [vmem:[#allocation8 + $0x118] sm:$0xff]
    %v803 = vld [vmem:[#allocation8 + $0x120] sm:$0xff]
    %v804 = vld [vmem:[#allocation8 + $0x128] sm:$0xff]
    %v805 = vld [vmem:[#allocation8 + $0x130] sm:$0xff]
    %v806 = vld [vmem:[#allocation8 + $0x138] sm:$0xff]
    %v807 = vld [vmem:[#allocation8 + $0x140] sm:$0xff]
    %v808 = vld [vmem:[#allocation8 + $0x148] sm:$0xff]
    %v809 = vld [vmem:[#allocation8 + $0x150] sm:$0xff]
    %v810 = vld [vmem:[#allocation8 + $0x158] sm:$0xff]
    %v811 = vld [vmem:[#allocation8 + $0x160] sm:$0xff]
    %v812 = vld [vmem:[#allocation8 + $0x168] sm:$0xff]
    %v813 = vld [vmem:[#allocation8 + $0x170] sm:$0xff]
    %v814 = vld [vmem:[#allocation8 + $0x178] sm:$0xff]
    %v815 = vld [vmem:[#allocation8 + $0x180] sm:$0xff]
    %v816 = vld [vmem:[#allocation8 + $0x188] sm:$0xff]
    %v817 = vld [vmem:[#allocation8 + $0x190] sm:$0xff]
    %v818 = vld [vmem:[#allocation8 + $0x198] sm:$0xff]
    %v819 = vld [vmem:[#allocation8 + $0x1a0] sm:$0xff]
    %v820 = vld [vmem:[#allocation8 + $0x1a8] sm:$0xff]
    %v821 = vld [vmem:[#allocation8 + $0x1b0] sm:$0xff]
    %v822 = vld [vmem:[#allocation8 + $0x1b8] sm:$0xff]
    %v823 = vld [vmem:[#allocation8 + $0x1c0] sm:$0xff]
    %v824 = vld [vmem:[#allocation8 + $0x1c8] sm:$0xff]
    %v825 = vld [vmem:[#allocation8 + $0x1d0] sm:$0xff]
    %v826 = vld [vmem:[#allocation8 + $0x1d8] sm:$0xff]
    %v827 = vld [vmem:[#allocation8 + $0x1e0] sm:$0xff]
    %v828 = vld [vmem:[#allocation8 + $0x1e8] sm:$0xff]
    %v829 = vld [vmem:[#allocation8 + $0x1f0] sm:$0xff]
    %v830 = vld [vmem:[#allocation8 + $0x1f8] sm:$0xff]
    %v831 = vld [vmem:[#allocation8 + $0x200] sm:$0xff]
    %v832 = vld [vmem:[#allocation8 + $0x208] sm:$0xff]
    %v833 = vld [vmem:[#allocation8 + $0x210] sm:$0xff]
    %v834 = vld [vmem:[#allocation8 + $0x218] sm:$0xff]
    %v835 = vld [vmem:[#allocation8 + $0x220] sm:$0xff]
    %v836 = vld [vmem:[#allocation8 + $0x228] sm:$0xff]
    %v837 = vld [vmem:[#allocation8 + $0x230] sm:$0xff]
    %v838 = vld [vmem:[#allocation8 + $0x238] sm:$0xff]
    %v839 = vld [vmem:[#allocation8 + $0x240] sm:$0xff]
    %v840 = vld [vmem:[#allocation8 + $0x248] sm:$0xff]
    %v841 = vld [vmem:[#allocation8 + $0x250] sm:$0xff]
    %v842 = vld [vmem:[#allocation8 + $0x258] sm:$0xff]
    %v843 = vld [vmem:[#allocation8 + $0x260] sm:$0xff]
    %v844 = vld [vmem:[#allocation8 + $0x268] sm:$0xff]
    %v845 = vld [vmem:[#allocation8 + $0x270] sm:$0xff]
    %v846 = vld [vmem:[#allocation8 + $0x278] sm:$0xff]
    %v847 = vld [vmem:[#allocation8 + $0x280] sm:$0xff]
    %v848 = vld [vmem:[#allocation8 + $0x288] sm:$0xff]
    %v849 = vld [vmem:[#allocation8 + $0x290] sm:$0xff]
    %v850 = vld [vmem:[#allocation8 + $0x298] sm:$0xff]
    %v851 = vld [vmem:[#allocation8 + $0x2a0] sm:$0xff]
    %v852 = vld [vmem:[#allocation8 + $0x2a8] sm:$0xff]
    %v853 = vld [vmem:[#allocation8 + $0x2b0] sm:$0xff]
    %v854 = vld [vmem:[#allocation8 + $0x2b8] sm:$0xff]
    %v855 = vld [vmem:[#allocation8 + $0x2c0] sm:$0xff]
    %v856 = vld [vmem:[#allocation8 + $0x2c8] sm:$0xff]
    %v857 = vld [vmem:[#allocation8 + $0x2d0] sm:$0xff]
    %v858 = vld [vmem:[#allocation8 + $0x2d8] sm:$0xff]
    %v859 = vld [vmem:[#allocation8 + $0x2e0] sm:$0xff]
    %v860 = vld [vmem:[#allocation8 + $0x2e8] sm:$0xff]
    %v861 = vld [vmem:[#allocation8 + $0x2f0] sm:$0xff]
    %v862 = vld [vmem:[#allocation8 + $0x2f8] sm:$0xff]
    %v863 = vld [vmem:[#allocation8 + $0x300] sm:$0xff]
    %v864 = vld [vmem:[#allocation8 + $0x308] sm:$0xff]
    %v865 = vld [vmem:[#allocation8 + $0x310] sm:$0xff]
    %v866 = vld [vmem:[#allocation8 + $0x318] sm:$0xff]
    %v867 = vld [vmem:[#allocation8 + $0x320] sm:$0xff]
    %v868 = vld [vmem:[#allocation8 + $0x328] sm:$0xff]
    %v869 = vld [vmem:[#allocation8 + $0x330] sm:$0xff]
    %v870 = vld [vmem:[#allocation8 + $0x338] sm:$0xff]
    %v871 = vld [vmem:[#allocation8 + $0x340] sm:$0xff]
    %v872 = vld [vmem:[#allocation8 + $0x348] sm:$0xff]
    %v873 = vld [vmem:[#allocation8 + $0x350] sm:$0xff]
    %v874 = vld [vmem:[#allocation8 + $0x358] sm:$0xff]
    %v875 = vld [vmem:[#allocation8 + $0x360] sm:$0xff]
    %v876 = vld [vmem:[#allocation8 + $0x368] sm:$0xff]
    %v877 = vld [vmem:[#allocation8 + $0x370] sm:$0xff]
    %v878 = vld [vmem:[#allocation8 + $0x378] sm:$0xff]
    %v879 = vld [vmem:[#allocation8 + $0x380] sm:$0xff]
    %v880 = vld [vmem:[#allocation8 + $0x388] sm:$0xff]
    %v881 = vld [vmem:[#allocation8 + $0x390] sm:$0xff]
    %v882 = vld [vmem:[#allocation8 + $0x398] sm:$0xff]
    %v883 = vld [vmem:[#allocation8 + $0x3a0] sm:$0xff]
    %v884 = vld [vmem:[#allocation8 + $0x3a8] sm:$0xff]
    %v885 = vld [vmem:[#allocation8 + $0x3b0] sm:$0xff]
    %v886 = vld [vmem:[#allocation8 + $0x3b8] sm:$0xff]
    %v887 = vld [vmem:[#allocation8 + $0x3c0] sm:$0xff]
    %v888 = vld [vmem:[#allocation8 + $0x3c8] sm:$0xff]
    %v889 = vld [vmem:[#allocation8 + $0x3d0] sm:$0xff]
    %v890 = vld [vmem:[#allocation8 + $0x3d8] sm:$0xff]
    %v891 = vld [vmem:[#allocation8 + $0x3e0] sm:$0xff]
    %v892 = vld [vmem:[#allocation8 + $0x3e8] sm:$0xff]
    %v893 = vld [vmem:[#allocation8 + $0x3f0] sm:$0xff]
    %v894 = vld [vmem:[#allocation8 + $0x3f8] sm:$0xff]
    %v895 = vld [vmem:[#allocation8 + $0x400] sm:$0xff]
    %v896 = vld [vmem:[#allocation8 + $0x408] sm:$0xff]
    %v897 = vld [vmem:[#allocation8 + $0x410] sm:$0xff]
    %v898 = vld [vmem:[#allocation8 + $0x418] sm:$0xff]
    %v899 = vld [vmem:[#allocation8 + $0x420] sm:$0xff]
    %v900 = vld [vmem:[#allocation8 + $0x428] sm:$0xff]
    %v901 = vld [vmem:[#allocation8 + $0x430] sm:$0xff]
    %v902 = vld [vmem:[#allocation8 + $0x438] sm:$0xff]
    %v903 = vld [vmem:[#allocation8 + $0x440] sm:$0xff]
    %v904 = vld [vmem:[#allocation8 + $0x448] sm:$0xff]
    %v905 = vld [vmem:[#allocation8 + $0x450] sm:$0xff]
    %v906 = vld [vmem:[#allocation8 + $0x458] sm:$0xff]
    %v907 = vld [vmem:[#allocation8 + $0x460] sm:$0xff]
    %v908 = vld [vmem:[#allocation8 + $0x468] sm:$0xff]
    %v909 = vld [vmem:[#allocation8 + $0x470] sm:$0xff]
    %v910 = vld [vmem:[#allocation8 + $0x478] sm:$0xff]
    %v911 = vld [vmem:[#allocation8 + $0x480] sm:$0xff]
    %v912 = vld [vmem:[#allocation8 + $0x488] sm:$0xff]
    %v913 = vld [vmem:[#allocation8 + $0x490] sm:$0xff]
    %v914 = vld [vmem:[#allocation8 + $0x498] sm:$0xff]
    %v915 = vld [vmem:[#allocation8 + $0x4a0] sm:$0xff]
    %v916 = vld [vmem:[#allocation8 + $0x4a8] sm:$0xff]
    %v917 = vld [vmem:[#allocation8 + $0x4b0] sm:$0xff]
    %v918 = vld [vmem:[#allocation8 + $0x4b8] sm:$0xff]
    %v919 = vld [vmem:[#allocation8 + $0x4c0] sm:$0xff]
    %v920 = vld [vmem:[#allocation8 + $0x4c8] sm:$0xff]
    %v921 = vld [vmem:[#allocation8 + $0x4d0] sm:$0xff]
    %v922 = vld [vmem:[#allocation8 + $0x4d8] sm:$0xff]
    %v923 = vld [vmem:[#allocation8 + $0x4e0] sm:$0xff]
    %v924 = vld [vmem:[#allocation8 + $0x4e8] sm:$0xff]
    %v925 = vld [vmem:[#allocation8 + $0x4f0] sm:$0xff]
    %v926 = vld [vmem:[#allocation8 + $0x4f8] sm:$0xff]
    %v927 = vld [vmem:[#allocation8 + $0x500] sm:$0xff]
    %v928 = vld [vmem:[#allocation8 + $0x508] sm:$0xff]
    %v929 = vld [vmem:[#allocation8 + $0x510] sm:$0xff]
    %v930 = vld [vmem:[#allocation8 + $0x518] sm:$0xff]
    %v931 = vld [vmem:[#allocation8 + $0x520] sm:$0xff]
    %v932 = vld [vmem:[#allocation8 + $0x528] sm:$0xff]
    %v933 = vld [vmem:[#allocation8 + $0x530] sm:$0xff]
    %v934 = vld [vmem:[#allocation8 + $0x538] sm:$0xff]
    %v935 = vld [vmem:[#allocation8 + $0x540] sm:$0xff]
    %v936 = vld [vmem:[#allocation8 + $0x548] sm:$0xff]
    %v937 = vld [vmem:[#allocation8 + $0x550] sm:$0xff]
    %v938 = vld [vmem:[#allocation8 + $0x558] sm:$0xff]
    %v939 = vld [vmem:[#allocation8 + $0x560] sm:$0xff]
    %v940 = vld [vmem:[#allocation8 + $0x568] sm:$0xff]
    %v941 = vld [vmem:[#allocation8 + $0x570] sm:$0xff]
    %v942 = vld [vmem:[#allocation8 + $0x578] sm:$0xff]
    %v943 = vld [vmem:[#allocation8 + $0x580] sm:$0xff]
    %v944 = vld [vmem:[#allocation8 + $0x588] sm:$0xff]
    %v945 = vld [vmem:[#allocation8 + $0x590] sm:$0xff]
    %v946 = vld [vmem:[#allocation8 + $0x598] sm:$0xff]
    %v947 = vld [vmem:[#allocation8 + $0x5a0] sm:$0xff]
    %v948 = vld [vmem:[#allocation8 + $0x5a8] sm:$0xff]
    %v949 = vld [vmem:[#allocation8 + $0x5b0] sm:$0xff]
    %v950 = vld [vmem:[#allocation8 + $0x5b8] sm:$0xff]
    %v951 = vld [vmem:[#allocation8 + $0x5c0] sm:$0xff]
    %v952 = vld [vmem:[#allocation8 + $0x5c8] sm:$0xff]
    %v953 = vld [vmem:[#allocation8 + $0x5d0] sm:$0xff]
    %v954 = vld [vmem:[#allocation8 + $0x5d8] sm:$0xff]
    %v955 = vld [vmem:[#allocation8 + $0x5e0] sm:$0xff]
    %v956 = vld [vmem:[#allocation8 + $0x5e8] sm:$0xff]
    %v957 = vld [vmem:[#allocation8 + $0x5f0] sm:$0xff]
    %v958 = vld [vmem:[#allocation8 + $0x5f8] sm:$0xff]
    %v959 = vld [vmem:[#allocation8 + $0x600] sm:$0xff]
    %v960 = vld [vmem:[#allocation8 + $0x608] sm:$0xff]
    %v961 = vld [vmem:[#allocation8 + $0x610] sm:$0xff]
    %v962 = vld [vmem:[#allocation8 + $0x618] sm:$0xff]
    %v963 = vld [vmem:[#allocation8 + $0x620] sm:$0xff]
    %v964 = vld [vmem:[#allocation8 + $0x628] sm:$0xff]
    %v965 = vld [vmem:[#allocation8 + $0x630] sm:$0xff]
    %v966 = vld [vmem:[#allocation8 + $0x638] sm:$0xff]
    %v967 = vld [vmem:[#allocation8 + $0x640] sm:$0xff]
    %v968 = vld [vmem:[#allocation8 + $0x648] sm:$0xff]
    %v969 = vld [vmem:[#allocation8 + $0x650] sm:$0xff]
    %v970 = vld [vmem:[#allocation8 + $0x658] sm:$0xff]
    %v971 = vld [vmem:[#allocation8 + $0x660] sm:$0xff]
    %v972 = vld [vmem:[#allocation8 + $0x668] sm:$0xff]
    %v973 = vld [vmem:[#allocation8 + $0x670] sm:$0xff]
    %v974 = vld [vmem:[#allocation8 + $0x678] sm:$0xff]
    %v975 = vld [vmem:[#allocation8 + $0x680] sm:$0xff]
    %v976 = vld [vmem:[#allocation8 + $0x688] sm:$0xff]
    %v977 = vld [vmem:[#allocation8 + $0x690] sm:$0xff]
    %v978 = vld [vmem:[#allocation8 + $0x698] sm:$0xff]
    %v979 = vld [vmem:[#allocation8 + $0x6a0] sm:$0xff]
    %v980 = vld [vmem:[#allocation8 + $0x6a8] sm:$0xff]
    %v981 = vld [vmem:[#allocation8 + $0x6b0] sm:$0xff]
    %v982 = vld [vmem:[#allocation8 + $0x6b8] sm:$0xff]
    %v983 = vld [vmem:[#allocation8 + $0x6c0] sm:$0xff]
    %v984 = vld [vmem:[#allocation8 + $0x6c8] sm:$0xff]
    %v985 = vld [vmem:[#allocation8 + $0x6d0] sm:$0xff]
    %v986 = vld [vmem:[#allocation8 + $0x6d8] sm:$0xff]
    %v987 = vld [vmem:[#allocation8 + $0x6e0] sm:$0xff]
    %v988 = vld [vmem:[#allocation8 + $0x6e8] sm:$0xff]
    %v989 = vld [vmem:[#allocation8 + $0x6f0] sm:$0xff]
    %v990 = vld [vmem:[#allocation8 + $0x6f8] sm:$0xff]
    %v991 = vld [vmem:[#allocation8 + $0x700] sm:$0xff]
    %v992 = vld [vmem:[#allocation8 + $0x708] sm:$0xff]
    %v993 = vld [vmem:[#allocation8 + $0x710] sm:$0xff]
    %v994 = vld [vmem:[#allocation8 + $0x718] sm:$0xff]
    %v995 = vld [vmem:[#allocation8 + $0x720] sm:$0xff]
    %v996 = vld [vmem:[#allocation8 + $0x728] sm:$0xff]
    %v997 = vld [vmem:[#allocation8 + $0x730] sm:$0xff]
    %v998 = vld [vmem:[#allocation8 + $0x738] sm:$0xff]
    %v999 = vld [vmem:[#allocation8 + $0x740] sm:$0xff]
    %v1000 = vld [vmem:[#allocation8 + $0x748] sm:$0xff]
    %v1001 = vld [vmem:[#allocation8 + $0x750] sm:$0xff]
    %v1002 = vld [vmem:[#allocation8 + $0x758] sm:$0xff]
    %v1003 = vld [vmem:[#allocation8 + $0x760] sm:$0xff]
    %v1004 = vld [vmem:[#allocation8 + $0x768] sm:$0xff]
    %v1005 = vld [vmem:[#allocation8 + $0x770] sm:$0xff]
    %v1006 = vld [vmem:[#allocation8 + $0x778] sm:$0xff]
    %v1007 = vld [vmem:[#allocation8 + $0x780] sm:$0xff]
    %v1008 = vld [vmem:[#allocation8 + $0x788] sm:$0xff]
    %v1009 = vld [vmem:[#allocation8 + $0x790] sm:$0xff]
    %v1010 = vld [vmem:[#allocation8 + $0x798] sm:$0xff]
    %v1011 = vld [vmem:[#allocation8 + $0x7a0] sm:$0xff]
    %v1012 = vld [vmem:[#allocation8 + $0x7a8] sm:$0xff]
    %v1013 = vld [vmem:[#allocation8 + $0x7b0] sm:$0xff]
    %v1014 = vld [vmem:[#allocation8 + $0x7b8] sm:$0xff]
    %v1015 = vld [vmem:[#allocation8 + $0x7c0] sm:$0xff]
    %v1016 = vld [vmem:[#allocation8 + $0x7c8] sm:$0xff]
    %v1017 = vld [vmem:[#allocation8 + $0x7d0] sm:$0xff]
    %v1018 = vld [vmem:[#allocation8 + $0x7d8] sm:$0xff]
    %v1019 = vld [vmem:[#allocation8 + $0x7e0] sm:$0xff]
    %v1020 = vld [vmem:[#allocation8 + $0x7e8] sm:$0xff]
    %v1021 = vld [vmem:[#allocation8 + $0x7f0] sm:$0xff]
    %v1022 = vld [vmem:[#allocation8 + $0x7f8] sm:$0xff]
    %v1023 = vld [vmem:[%s4] sm:$0x1]
    %v1025 = vlaneseq
    %v1026 = vshrl.u32 %v1025, 7
    %v1027 = vsub.s32 0, %v1026
    %v1028 = vrot.slane %v1023, %v1027
    %1030 = vmatprep.subr.mxu0 0.0
    %1031 = vmatpush1.msra.mxu0 %v782
    %1032 = vmatprep.subr.mxu0 0.0
    %1033 = vmatpush1.msra.mxu0 %v781
    %1034 = vmatprep.subr.mxu0 0.0
    %1035 = vmatpush1.msra.mxu0 %v780
    %1036 = vmatprep.subr.mxu0 0.0
    %1037 = vmatpush1.msra.mxu0 %v779
    %1038 = vmatprep.subr.mxu0 0.0
    %1039 = vmatpush1.msra.mxu0 %v778
    %1040 = vmatprep.subr.mxu0 0.0
    %1041 = vmatpush1.msra.mxu0 %v777
    %1042 = vmatprep.subr.mxu0 0.0
    %1043 = vmatpush1.msra.mxu0 %v776
    %1044 = vmatprep.subr.mxu0 0.0
    %1045 = vmatpush1.msra.mxu0 %v775
    %1046 = vmatprep.subr.mxu0 0.0
    %1047 = vmatpush1.msra.mxu0 %v774
    %1048 = vmatprep.subr.mxu0 0.0
    %1049 = vmatpush1.msra.mxu0 %v773
    %1050 = vmatprep.subr.mxu0 0.0
    %1051 = vmatpush1.msra.mxu0 %v772
    %1052 = vmatprep.subr.mxu0 0.0
    %1053 = vmatpush1.msra.mxu0 %v771
    %1054 = vmatprep.subr.mxu0 0.0
    %1055 = vmatpush1.msra.mxu0 %v770
    %1056 = vmatprep.subr.mxu0 0.0
    %1057 = vmatpush1.msra.mxu0 %v769
    %1058 = vmatprep.subr.mxu0 0.0
    %1059 = vmatpush1.msra.mxu0 %v768
    %1060 = vmatprep.subr.mxu0 0.0
    %1061 = vmatpush1.msra.mxu0 %v767
    %1062 = vmatprep.subr.mxu0 0.0
    %1063 = vmatpush2.msra.mxu0 %v798
    %1064 = vmatprep.subr.mxu0 0.0
    %1065 = vmatpush2.msra.mxu0 %v797
    %1066 = vmatprep.subr.mxu0 0.0
    %1067 = vmatpush2.msra.mxu0 %v796
    %1068 = vmatprep.subr.mxu0 0.0
    %1069 = vmatpush2.msra.mxu0 %v795
    %1070 = vmatprep.subr.mxu0 0.0
    %1071 = vmatpush2.msra.mxu0 %v794
    %1072 = vmatprep.subr.mxu0 0.0
    %1073 = vmatpush2.msra.mxu0 %v793
    %1074 = vmatprep.subr.mxu0 0.0
    %1075 = vmatpush2.msra.mxu0 %v792
    %1076 = vmatprep.subr.mxu0 0.0
    %1077 = vmatpush2.msra.mxu0 %v791
    %1078 = vmatprep.subr.mxu0 0.0
    %1079 = vmatpush2.msra.mxu0 %v790
    %1080 = vmatprep.subr.mxu0 0.0
    %1081 = vmatpush2.msra.mxu0 %v789
    %1082 = vmatprep.subr.mxu0 0.0
    %1083 = vmatpush2.msra.mxu0 %v788
    %1084 = vmatprep.subr.mxu0 0.0
    %1085 = vmatpush2.msra.mxu0 %v787
    %1086 = vmatprep.subr.mxu0 0.0
    %1087 = vmatpush2.msra.mxu0 %v786
    %1088 = vmatprep.subr.mxu0 0.0
    %1089 = vmatpush2.msra.mxu0 %v785
    %1090 = vmatprep.subr.mxu0 0.0
    %1091 = vmatpush2.msra.mxu0 %v784
    %1092 = vmatprep.subr.mxu0 0.0
    %1093 = vmatpush2.msra.mxu0 %v783
    %1094 = vmatprep.mubr.f32.mxu0 %v660
    %1095 = vmatmul.mubr.f32.gmra.mxu0 %v659
    %v1096 = vpop.f32.mrf.mxu0
    %v1097 = vadd.f32 %v1028, %v1096
    %v1098 = vpop.f32.mrf.mxu0
    %1099 = vdwg.mxu0
    %1100 = vmatprep.subr.mxu0 0.0
    %1101 = vmatpush1.msra.mxu0 %v814
    %1102 = vmatprep.subr.mxu0 0.0
    %1103 = vmatpush1.msra.mxu0 %v813
    %1104 = vmatprep.subr.mxu0 0.0
    %1105 = vmatpush1.msra.mxu0 %v812
    %1106 = vmatprep.subr.mxu0 0.0
    %1107 = vmatpush1.msra.mxu0 %v811
    %1108 = vmatprep.subr.mxu0 0.0
    %1109 = vmatpush1.msra.mxu0 %v810
    %1110 = vmatprep.subr.mxu0 0.0
    %1111 = vmatpush1.msra.mxu0 %v809
    %1112 = vmatprep.subr.mxu0 0.0
    %1113 = vmatpush1.msra.mxu0 %v808
    %1114 = vmatprep.subr.mxu0 0.0
    %1115 = vmatpush1.msra.mxu0 %v807
    %1116 = vmatprep.subr.mxu0 0.0
    %1117 = vmatpush1.msra.mxu0 %v806
    %1118 = vmatprep.subr.mxu0 0.0
    %1119 = vmatpush1.msra.mxu0 %v805
    %1120 = vmatprep.subr.mxu0 0.0
    %1121 = vmatpush1.msra.mxu0 %v804
    %1122 = vmatprep.subr.mxu0 0.0
    %1123 = vmatpush1.msra.mxu0 %v803
    %1124 = vmatprep.subr.mxu0 0.0
    %1125 = vmatpush1.msra.mxu0 %v802
    %1126 = vmatprep.subr.mxu0 0.0
    %1127 = vmatpush1.msra.mxu0 %v801
    %1128 = vmatprep.subr.mxu0 0.0
    %1129 = vmatpush1.msra.mxu0 %v800
    %1130 = vmatprep.subr.mxu0 0.0
    %1131 = vmatpush1.msra.mxu0 %v799
    %1132 = vmatprep.subr.mxu0 0.0
    %1133 = vmatpush2.msra.mxu0 %v830
    %1134 = vmatprep.subr.mxu0 0.0
    %1135 = vmatpush2.msra.mxu0 %v829
    %1136 = vmatprep.subr.mxu0 0.0
    %1137 = vmatpush2.msra.mxu0 %v828
    %1138 = vmatprep.subr.mxu0 0.0
    %1139 = vmatpush2.msra.mxu0 %v827
    %1140 = vmatprep.subr.mxu0 0.0
    %1141 = vmatpush2.msra.mxu0 %v826
    %1142 = vmatprep.subr.mxu0 0.0
    %1143 = vmatpush2.msra.mxu0 %v825
    %1144 = vmatprep.subr.mxu0 0.0
    %1145 = vmatpush2.msra.mxu0 %v824
    %1146 = vmatprep.subr.mxu0 0.0
    %1147 = vmatpush2.msra.mxu0 %v823
    %1148 = vmatprep.subr.mxu0 0.0
    %1149 = vmatpush2.msra.mxu0 %v822
    %1150 = vmatprep.subr.mxu0 0.0
    %1151 = vmatpush2.msra.mxu0 %v821
    %1152 = vmatprep.subr.mxu0 0.0
    %1153 = vmatpush2.msra.mxu0 %v820
    %1154 = vmatprep.subr.mxu0 0.0
    %1155 = vmatpush2.msra.mxu0 %v819
    %1156 = vmatprep.subr.mxu0 0.0
    %1157 = vmatpush2.msra.mxu0 %v818
    %1158 = vmatprep.subr.mxu0 0.0
    %1159 = vmatpush2.msra.mxu0 %v817
    %1160 = vmatprep.subr.mxu0 0.0
    %1161 = vmatpush2.msra.mxu0 %v816
    %1162 = vmatprep.subr.mxu0 0.0
    %1163 = vmatpush2.msra.mxu0 %v815
    %1164 = vmatprep.mubr.f32.mxu0 %v662
    %1165 = vmatmul.mubr.f32.gmra.mxu0 %v661
    %v1166 = vpop.f32.mrf.mxu0
    %v1167 = vadd.f32 %v1097, %v1166
    %v1168 = vpop.f32.mrf.mxu0
    %1169 = vdwg.mxu0
    %1170 = vmatprep.subr.mxu0 0.0
    %1171 = vmatpush1.msra.mxu0 %v846
    %1172 = vmatprep.subr.mxu0 0.0
    %1173 = vmatpush1.msra.mxu0 %v845
    %1174 = vmatprep.subr.mxu0 0.0
    %1175 = vmatpush1.msra.mxu0 %v844
    %1176 = vmatprep.subr.mxu0 0.0
    %1177 = vmatpush1.msra.mxu0 %v843
    %1178 = vmatprep.subr.mxu0 0.0
    %1179 = vmatpush1.msra.mxu0 %v842
    %1180 = vmatprep.subr.mxu0 0.0
    %1181 = vmatpush1.msra.mxu0 %v841
    %1182 = vmatprep.subr.mxu0 0.0
    %1183 = vmatpush1.msra.mxu0 %v840
    %1184 = vmatprep.subr.mxu0 0.0
    %1185 = vmatpush1.msra.mxu0 %v839
    %1186 = vmatprep.subr.mxu0 0.0
    %1187 = vmatpush1.msra.mxu0 %v838
    %1188 = vmatprep.subr.mxu0 0.0
    %1189 = vmatpush1.msra.mxu0 %v837
    %1190 = vmatprep.subr.mxu0 0.0
    %1191 = vmatpush1.msra.mxu0 %v836
    %1192 = vmatprep.subr.mxu0 0.0
    %1193 = vmatpush1.msra.mxu0 %v835
    %1194 = vmatprep.subr.mxu0 0.0
    %1195 = vmatpush1.msra.mxu0 %v834
    %1196 = vmatprep.subr.mxu0 0.0
    %1197 = vmatpush1.msra.mxu0 %v833
    %1198 = vmatprep.subr.mxu0 0.0
    %1199 = vmatpush1.msra.mxu0 %v832
    %1200 = vmatprep.subr.mxu0 0.0
    %1201 = vmatpush1.msra.mxu0 %v831
    %1202 = vmatprep.subr.mxu0 0.0
    %1203 = vmatpush2.msra.mxu0 %v862
    %1204 = vmatprep.subr.mxu0 0.0
    %1205 = vmatpush2.msra.mxu0 %v861
    %1206 = vmatprep.subr.mxu0 0.0
    %1207 = vmatpush2.msra.mxu0 %v860
    %1208 = vmatprep.subr.mxu0 0.0
    %1209 = vmatpush2.msra.mxu0 %v859
    %1210 = vmatprep.subr.mxu0 0.0
    %1211 = vmatpush2.msra.mxu0 %v858
    %1212 = vmatprep.subr.mxu0 0.0
    %1213 = vmatpush2.msra.mxu0 %v857
    %1214 = vmatprep.subr.mxu0 0.0
    %1215 = vmatpush2.msra.mxu0 %v856
    %1216 = vmatprep.subr.mxu0 0.0
    %1217 = vmatpush2.msra.mxu0 %v855
    %1218 = vmatprep.subr.mxu0 0.0
    %1219 = vmatpush2.msra.mxu0 %v854
    %1220 = vmatprep.subr.mxu0 0.0
    %1221 = vmatpush2.msra.mxu0 %v853
    %1222 = vmatprep.subr.mxu0 0.0
    %1223 = vmatpush2.msra.mxu0 %v852
    %1224 = vmatprep.subr.mxu0 0.0
    %1225 = vmatpush2.msra.mxu0 %v851
    %1226 = vmatprep.subr.mxu0 0.0
    %1227 = vmatpush2.msra.mxu0 %v850
    %1228 = vmatprep.subr.mxu0 0.0
    %1229 = vmatpush2.msra.mxu0 %v849
    %1230 = vmatprep.subr.mxu0 0.0
    %1231 = vmatpush2.msra.mxu0 %v848
    %1232 = vmatprep.subr.mxu0 0.0
    %1233 = vmatpush2.msra.mxu0 %v847
    %1234 = vmatprep.mubr.f32.mxu0 %v664
    %1235 = vmatmul.mubr.f32.gmra.mxu0 %v663
    %v1236 = vpop.f32.mrf.mxu0
    %v1237 = vadd.f32 %v1167, %v1236
    %v1238 = vpop.f32.mrf.mxu0
    %1239 = vdwg.mxu0
    %1240 = vmatprep.subr.mxu0 0.0
    %1241 = vmatpush1.msra.mxu0 %v878
    %1242 = vmatprep.subr.mxu0 0.0
    %1243 = vmatpush1.msra.mxu0 %v877
    %1244 = vmatprep.subr.mxu0 0.0
    %1245 = vmatpush1.msra.mxu0 %v876
    %1246 = vmatprep.subr.mxu0 0.0
    %1247 = vmatpush1.msra.mxu0 %v875
    %1248 = vmatprep.subr.mxu0 0.0
    %1249 = vmatpush1.msra.mxu0 %v874
    %1250 = vmatprep.subr.mxu0 0.0
    %1251 = vmatpush1.msra.mxu0 %v873
    %1252 = vmatprep.subr.mxu0 0.0
    %1253 = vmatpush1.msra.mxu0 %v872
    %1254 = vmatprep.subr.mxu0 0.0
    %1255 = vmatpush1.msra.mxu0 %v871
    %1256 = vmatprep.subr.mxu0 0.0
    %1257 = vmatpush1.msra.mxu0 %v870
    %1258 = vmatprep.subr.mxu0 0.0
    %1259 = vmatpush1.msra.mxu0 %v869
    %1260 = vmatprep.subr.mxu0 0.0
    %1261 = vmatpush1.msra.mxu0 %v868
    %1262 = vmatprep.subr.mxu0 0.0
    %1263 = vmatpush1.msra.mxu0 %v867
    %1264 = vmatprep.subr.mxu0 0.0
    %1265 = vmatpush1.msra.mxu0 %v866
    %1266 = vmatprep.subr.mxu0 0.0
    %1267 = vmatpush1.msra.mxu0 %v865
    %1268 = vmatprep.subr.mxu0 0.0
    %1269 = vmatpush1.msra.mxu0 %v864
    %1270 = vmatprep.subr.mxu0 0.0
    %1271 = vmatpush1.msra.mxu0 %v863
    %1272 = vmatprep.subr.mxu0 0.0
    %1273 = vmatpush2.msra.mxu0 %v894
    %1274 = vmatprep.subr.mxu0 0.0
    %1275 = vmatpush2.msra.mxu0 %v893
    %1276 = vmatprep.subr.mxu0 0.0
    %1277 = vmatpush2.msra.mxu0 %v892
    %1278 = vmatprep.subr.mxu0 0.0
    %1279 = vmatpush2.msra.mxu0 %v891
    %1280 = vmatprep.subr.mxu0 0.0
    %1281 = vmatpush2.msra.mxu0 %v890
    %1282 = vmatprep.subr.mxu0 0.0
    %1283 = vmatpush2.msra.mxu0 %v889
    %1284 = vmatprep.subr.mxu0 0.0
    %1285 = vmatpush2.msra.mxu0 %v888
    %1286 = vmatprep.subr.mxu0 0.0
    %1287 = vmatpush2.msra.mxu0 %v887
    %1288 = vmatprep.subr.mxu0 0.0
    %1289 = vmatpush2.msra.mxu0 %v886
    %1290 = vmatprep.subr.mxu0 0.0
    %1291 = vmatpush2.msra.mxu0 %v885
    %1292 = vmatprep.subr.mxu0 0.0
    %1293 = vmatpush2.msra.mxu0 %v884
    %1294 = vmatprep.subr.mxu0 0.0
    %1295 = vmatpush2.msra.mxu0 %v883
    %1296 = vmatprep.subr.mxu0 0.0
    %1297 = vmatpush2.msra.mxu0 %v882
    %1298 = vmatprep.subr.mxu0 0.0
    %1299 = vmatpush2.msra.mxu0 %v881
    %1300 = vmatprep.subr.mxu0 0.0
    %1301 = vmatpush2.msra.mxu0 %v880
    %1302 = vmatprep.subr.mxu0 0.0
    %1303 = vmatpush2.msra.mxu0 %v879
    %1304 = vmatprep.mubr.f32.mxu0 %v666
    %1305 = vmatmul.mubr.f32.gmra.mxu0 %v665
    %v1306 = vpop.f32.mrf.mxu0
    %v1307 = vadd.f32 %v1237, %v1306
    %v1308 = vpop.f32.mrf.mxu0
    %1309 = vdwg.mxu0
    %1310 = vmatprep.subr.mxu0 0.0
    %1311 = vmatpush1.msra.mxu0 %v910
    %1312 = vmatprep.subr.mxu0 0.0
    %1313 = vmatpush1.msra.mxu0 %v909
    %1314 = vmatprep.subr.mxu0 0.0
    %1315 = vmatpush1.msra.mxu0 %v908
    %1316 = vmatprep.subr.mxu0 0.0
    %1317 = vmatpush1.msra.mxu0 %v907
    %1318 = vmatprep.subr.mxu0 0.0
    %1319 = vmatpush1.msra.mxu0 %v906
    %1320 = vmatprep.subr.mxu0 0.0
    %1321 = vmatpush1.msra.mxu0 %v905
    %1322 = vmatprep.subr.mxu0 0.0
    %1323 = vmatpush1.msra.mxu0 %v904
    %1324 = vmatprep.subr.mxu0 0.0
    %1325 = vmatpush1.msra.mxu0 %v903
    %1326 = vmatprep.subr.mxu0 0.0
    %1327 = vmatpush1.msra.mxu0 %v902
    %1328 = vmatprep.subr.mxu0 0.0
    %1329 = vmatpush1.msra.mxu0 %v901
    %1330 = vmatprep.subr.mxu0 0.0
    %1331 = vmatpush1.msra.mxu0 %v900
    %1332 = vmatprep.subr.mxu0 0.0
    %1333 = vmatpush1.msra.mxu0 %v899
    %1334 = vmatprep.subr.mxu0 0.0
    %1335 = vmatpush1.msra.mxu0 %v898
    %1336 = vmatprep.subr.mxu0 0.0
    %1337 = vmatpush1.msra.mxu0 %v897
    %1338 = vmatprep.subr.mxu0 0.0
    %1339 = vmatpush1.msra.mxu0 %v896
    %1340 = vmatprep.subr.mxu0 0.0
    %1341 = vmatpush1.msra.mxu0 %v895
    %1342 = vmatprep.subr.mxu0 0.0
    %1343 = vmatpush2.msra.mxu0 %v926
    %1344 = vmatprep.subr.mxu0 0.0
    %1345 = vmatpush2.msra.mxu0 %v925
    %1346 = vmatprep.subr.mxu0 0.0
    %1347 = vmatpush2.msra.mxu0 %v924
    %1348 = vmatprep.subr.mxu0 0.0
    %1349 = vmatpush2.msra.mxu0 %v923
    %1350 = vmatprep.subr.mxu0 0.0
    %1351 = vmatpush2.msra.mxu0 %v922
    %1352 = vmatprep.subr.mxu0 0.0
    %1353 = vmatpush2.msra.mxu0 %v921
    %1354 = vmatprep.subr.mxu0 0.0
    %1355 = vmatpush2.msra.mxu0 %v920
    %1356 = vmatprep.subr.mxu0 0.0
    %1357 = vmatpush2.msra.mxu0 %v919
    %1358 = vmatprep.subr.mxu0 0.0
    %1359 = vmatpush2.msra.mxu0 %v918
    %1360 = vmatprep.subr.mxu0 0.0
    %1361 = vmatpush2.msra.mxu0 %v917
    %1362 = vmatprep.subr.mxu0 0.0
    %1363 = vmatpush2.msra.mxu0 %v916
    %1364 = vmatprep.subr.mxu0 0.0
    %1365 = vmatpush2.msra.mxu0 %v915
    %1366 = vmatprep.subr.mxu0 0.0
    %1367 = vmatpush2.msra.mxu0 %v914
    %1368 = vmatprep.subr.mxu0 0.0
    %1369 = vmatpush2.msra.mxu0 %v913
    %1370 = vmatprep.subr.mxu0 0.0
    %1371 = vmatpush2.msra.mxu0 %v912
    %1372 = vmatprep.subr.mxu0 0.0
    %1373 = vmatpush2.msra.mxu0 %v911
    %1374 = vmatprep.mubr.f32.mxu0 %v668
    %1375 = vmatmul.mubr.f32.gmra.mxu0 %v667
    %v1376 = vpop.f32.mrf.mxu0
    %v1377 = vadd.f32 %v1307, %v1376
    %v1378 = vpop.f32.mrf.mxu0
    %1379 = vdwg.mxu0
    %1380 = vmatprep.subr.mxu0 0.0
    %1381 = vmatpush1.msra.mxu0 %v942
    %1382 = vmatprep.subr.mxu0 0.0
    %1383 = vmatpush1.msra.mxu0 %v941
    %1384 = vmatprep.subr.mxu0 0.0
    %1385 = vmatpush1.msra.mxu0 %v940
    %1386 = vmatprep.subr.mxu0 0.0
    %1387 = vmatpush1.msra.mxu0 %v939
    %1388 = vmatprep.subr.mxu0 0.0
    %1389 = vmatpush1.msra.mxu0 %v938
    %1390 = vmatprep.subr.mxu0 0.0
    %1391 = vmatpush1.msra.mxu0 %v937
    %1392 = vmatprep.subr.mxu0 0.0
    %1393 = vmatpush1.msra.mxu0 %v936
    %1394 = vmatprep.subr.mxu0 0.0
    %1395 = vmatpush1.msra.mxu0 %v935
    %1396 = vmatprep.subr.mxu0 0.0
    %1397 = vmatpush1.msra.mxu0 %v934
    %1398 = vmatprep.subr.mxu0 0.0
    %1399 = vmatpush1.msra.mxu0 %v933
    %1400 = vmatprep.subr.mxu0 0.0
    %1401 = vmatpush1.msra.mxu0 %v932
    %1402 = vmatprep.subr.mxu0 0.0
    %1403 = vmatpush1.msra.mxu0 %v931
    %1404 = vmatprep.subr.mxu0 0.0
    %1405 = vmatpush1.msra.mxu0 %v930
    %1406 = vmatprep.subr.mxu0 0.0
    %1407 = vmatpush1.msra.mxu0 %v929
    %1408 = vmatprep.subr.mxu0 0.0
    %1409 = vmatpush1.msra.mxu0 %v928
    %1410 = vmatprep.subr.mxu0 0.0
    %1411 = vmatpush1.msra.mxu0 %v927
    %1412 = vmatprep.subr.mxu0 0.0
    %1413 = vmatpush2.msra.mxu0 %v958
    %1414 = vmatprep.subr.mxu0 0.0
    %1415 = vmatpush2.msra.mxu0 %v957
    %1416 = vmatprep.subr.mxu0 0.0
    %1417 = vmatpush2.msra.mxu0 %v956
    %1418 = vmatprep.subr.mxu0 0.0
    %1419 = vmatpush2.msra.mxu0 %v955
    %1420 = vmatprep.subr.mxu0 0.0
    %1421 = vmatpush2.msra.mxu0 %v954
    %1422 = vmatprep.subr.mxu0 0.0
    %1423 = vmatpush2.msra.mxu0 %v953
    %1424 = vmatprep.subr.mxu0 0.0
    %1425 = vmatpush2.msra.mxu0 %v952
    %1426 = vmatprep.subr.mxu0 0.0
    %1427 = vmatpush2.msra.mxu0 %v951
    %1428 = vmatprep.subr.mxu0 0.0
    %1429 = vmatpush2.msra.mxu0 %v950
    %1430 = vmatprep.subr.mxu0 0.0
    %1431 = vmatpush2.msra.mxu0 %v949
    %1432 = vmatprep.subr.mxu0 0.0
    %1433 = vmatpush2.msra.mxu0 %v948
    %1434 = vmatprep.subr.mxu0 0.0
    %1435 = vmatpush2.msra.mxu0 %v947
    %1436 = vmatprep.subr.mxu0 0.0
    %1437 = vmatpush2.msra.mxu0 %v946
    %1438 = vmatprep.subr.mxu0 0.0
    %1439 = vmatpush2.msra.mxu0 %v945
    %1440 = vmatprep.subr.mxu0 0.0
    %1441 = vmatpush2.msra.mxu0 %v944
    %1442 = vmatprep.subr.mxu0 0.0
    %1443 = vmatpush2.msra.mxu0 %v943
    %1444 = vmatprep.mubr.f32.mxu0 %v670
    %1445 = vmatmul.mubr.f32.gmra.mxu0 %v669
    %v1446 = vpop.f32.mrf.mxu0
    %v1447 = vadd.f32 %v1377, %v1446
    %v1448 = vpop.f32.mrf.mxu0
    %1449 = vdwg.mxu0
    %1450 = vmatprep.subr.mxu0 0.0
    %1451 = vmatpush1.msra.mxu0 %v974
    %1452 = vmatprep.subr.mxu0 0.0
    %1453 = vmatpush1.msra.mxu0 %v973
    %1454 = vmatprep.subr.mxu0 0.0
    %1455 = vmatpush1.msra.mxu0 %v972
    %1456 = vmatprep.subr.mxu0 0.0
    %1457 = vmatpush1.msra.mxu0 %v971
    %1458 = vmatprep.subr.mxu0 0.0
    %1459 = vmatpush1.msra.mxu0 %v970
    %1460 = vmatprep.subr.mxu0 0.0
    %1461 = vmatpush1.msra.mxu0 %v969
    %1462 = vmatprep.subr.mxu0 0.0
    %1463 = vmatpush1.msra.mxu0 %v968
    %1464 = vmatprep.subr.mxu0 0.0
    %1465 = vmatpush1.msra.mxu0 %v967
    %1466 = vmatprep.subr.mxu0 0.0
    %1467 = vmatpush1.msra.mxu0 %v966
    %1468 = vmatprep.subr.mxu0 0.0
    %1469 = vmatpush1.msra.mxu0 %v965
    %1470 = vmatprep.subr.mxu0 0.0
    %1471 = vmatpush1.msra.mxu0 %v964
    %1472 = vmatprep.subr.mxu0 0.0
    %1473 = vmatpush1.msra.mxu0 %v963
    %1474 = vmatprep.subr.mxu0 0.0
    %1475 = vmatpush1.msra.mxu0 %v962
    %1476 = vmatprep.subr.mxu0 0.0
    %1477 = vmatpush1.msra.mxu0 %v961
    %1478 = vmatprep.subr.mxu0 0.0
    %1479 = vmatpush1.msra.mxu0 %v960
    %1480 = vmatprep.subr.mxu0 0.0
    %1481 = vmatpush1.msra.mxu0 %v959
    %1482 = vmatprep.subr.mxu0 0.0
    %1483 = vmatpush2.msra.mxu0 %v990
    %1484 = vmatprep.subr.mxu0 0.0
    %1485 = vmatpush2.msra.mxu0 %v989
    %1486 = vmatprep.subr.mxu0 0.0
    %1487 = vmatpush2.msra.mxu0 %v988
    %1488 = vmatprep.subr.mxu0 0.0
    %1489 = vmatpush2.msra.mxu0 %v987
    %1490 = vmatprep.subr.mxu0 0.0
    %1491 = vmatpush2.msra.mxu0 %v986
    %1492 = vmatprep.subr.mxu0 0.0
    %1493 = vmatpush2.msra.mxu0 %v985
    %1494 = vmatprep.subr.mxu0 0.0
    %1495 = vmatpush2.msra.mxu0 %v984
    %1496 = vmatprep.subr.mxu0 0.0
    %1497 = vmatpush2.msra.mxu0 %v983
    %1498 = vmatprep.subr.mxu0 0.0
    %1499 = vmatpush2.msra.mxu0 %v982
    %1500 = vmatprep.subr.mxu0 0.0
    %1501 = vmatpush2.msra.mxu0 %v981
    %1502 = vmatprep.subr.mxu0 0.0
    %1503 = vmatpush2.msra.mxu0 %v980
    %1504 = vmatprep.subr.mxu0 0.0
    %1505 = vmatpush2.msra.mxu0 %v979
    %1506 = vmatprep.subr.mxu0 0.0
    %1507 = vmatpush2.msra.mxu0 %v978
    %1508 = vmatprep.subr.mxu0 0.0
    %1509 = vmatpush2.msra.mxu0 %v977
    %1510 = vmatprep.subr.mxu0 0.0
    %1511 = vmatpush2.msra.mxu0 %v976
    %1512 = vmatprep.subr.mxu0 0.0
    %1513 = vmatpush2.msra.mxu0 %v975
    %1514 = vmatprep.mubr.f32.mxu0 %v672
    %1515 = vmatmul.mubr.f32.gmra.mxu0 %v671
    %v1516 = vpop.f32.mrf.mxu0
    %v1517 = vadd.f32 %v1447, %v1516
    %v1518 = vpop.f32.mrf.mxu0
    %1519 = vdwg.mxu0
    %1520 = vmatprep.subr.mxu0 0.0
    %1521 = vmatpush1.msra.mxu0 %v1006
    %1522 = vmatprep.subr.mxu0 0.0
    %1523 = vmatpush1.msra.mxu0 %v1005
    %1524 = vmatprep.subr.mxu0 0.0
    %1525 = vmatpush1.msra.mxu0 %v1004
    %1526 = vmatprep.subr.mxu0 0.0
    %1527 = vmatpush1.msra.mxu0 %v1003
    %1528 = vmatprep.subr.mxu0 0.0
    %1529 = vmatpush1.msra.mxu0 %v1002
    %1530 = vmatprep.subr.mxu0 0.0
    %1531 = vmatpush1.msra.mxu0 %v1001
    %1532 = vmatprep.subr.mxu0 0.0
    %1533 = vmatpush1.msra.mxu0 %v1000
    %1534 = vmatprep.subr.mxu0 0.0
    %1535 = vmatpush1.msra.mxu0 %v999
    %1536 = vmatprep.subr.mxu0 0.0
    %1537 = vmatpush1.msra.mxu0 %v998
    %1538 = vmatprep.subr.mxu0 0.0
    %1539 = vmatpush1.msra.mxu0 %v997
    %1540 = vmatprep.subr.mxu0 0.0
    %1541 = vmatpush1.msra.mxu0 %v996
    %1542 = vmatprep.subr.mxu0 0.0
    %1543 = vmatpush1.msra.mxu0 %v995
    %1544 = vmatprep.subr.mxu0 0.0
    %1545 = vmatpush1.msra.mxu0 %v994
    %1546 = vmatprep.subr.mxu0 0.0
    %1547 = vmatpush1.msra.mxu0 %v993
    %1548 = vmatprep.subr.mxu0 0.0
    %1549 = vmatpush1.msra.mxu0 %v992
    %1550 = vmatprep.subr.mxu0 0.0
    %1551 = vmatpush1.msra.mxu0 %v991
    %1552 = vmatprep.subr.mxu0 0.0
    %1553 = vmatpush2.msra.mxu0 %v1022
    %1554 = vmatprep.subr.mxu0 0.0
    %1555 = vmatpush2.msra.mxu0 %v1021
    %1556 = vmatprep.subr.mxu0 0.0
    %1557 = vmatpush2.msra.mxu0 %v1020
    %1558 = vmatprep.subr.mxu0 0.0
    %1559 = vmatpush2.msra.mxu0 %v1019
    %1560 = vmatprep.subr.mxu0 0.0
    %1561 = vmatpush2.msra.mxu0 %v1018
    %1562 = vmatprep.subr.mxu0 0.0
    %1563 = vmatpush2.msra.mxu0 %v1017
    %1564 = vmatprep.subr.mxu0 0.0
    %1565 = vmatpush2.msra.mxu0 %v1016
    %1566 = vmatprep.subr.mxu0 0.0
    %1567 = vmatpush2.msra.mxu0 %v1015
    %1568 = vmatprep.subr.mxu0 0.0
    %1569 = vmatpush2.msra.mxu0 %v1014
    %1570 = vmatprep.subr.mxu0 0.0
    %1571 = vmatpush2.msra.mxu0 %v1013
    %1572 = vmatprep.subr.mxu0 0.0
    %1573 = vmatpush2.msra.mxu0 %v1012
    %1574 = vmatprep.subr.mxu0 0.0
    %1575 = vmatpush2.msra.mxu0 %v1011
    %1576 = vmatprep.subr.mxu0 0.0
    %1577 = vmatpush2.msra.mxu0 %v1010
    %1578 = vmatprep.subr.mxu0 0.0
    %1579 = vmatpush2.msra.mxu0 %v1009
    %1580 = vmatprep.subr.mxu0 0.0
    %1581 = vmatpush2.msra.mxu0 %v1008
    %1582 = vmatprep.subr.mxu0 0.0
    %1583 = vmatpush2.msra.mxu0 %v1007
    %1584 = vmatprep.mubr.f32.mxu0 %v674
    %1585 = vmatmul.mubr.f32.gmra.mxu0 %v673
    %v1586 = vpop.f32.mrf.mxu0
    %v1587 = vadd.f32 %v1517, %v1586
    %v1588 = vpop.f32.mrf.mxu0
    %1589 = vdwg.mxu0
    %1590 = vst [vmem:[#allocation10] sm:$0x3] %v1587
    // Predicated region
    $region38: #{tpu_custom_call.1} parent=1 // pred_check
      _
    $region39: #{tpu_custom_call.1} parent=1 // pred_check_branch
      %1592 = sbr.rel (0) target = $region41
    $region40: #{tpu_custom_call.1} parent=1 // pred_region
      %s1594 = ssub.s32 32, 32
      %1595 = vsyncadd [#allocation4], %s1594
      %s1597 = sshll.u32 [#allocation10], 4
      %s1598 = int_to_ptr.vmem [resolvable:$true] %s1597
      %1600 = dma.vmem_to_hbm [thread:$0]  %s1598, 32, %s5, [#allocation4]
    $region41: #{tpu_custom_call.1} parent=1 // pred_fallthru
      _
    // Predicated region
    $region42: #{tpu_custom_call.1} parent=1 // pred_check
      _
    $region43: #{tpu_custom_call.1} parent=1 // pred_check_branch
      %1602 = sbr.rel (0) target = $region45
    $region44: #{tpu_custom_call.1} parent=1 // pred_region
      %s1604 = ssub.s32 512, 512
      %1605 = vsyncadd [#allocation12], %s1604
      %s1607 = sshll.u32 [#allocation11], 4
      %s1608 = int_to_ptr.vmem [resolvable:$true] %s1607
      %1610 = dma.vmem_to_hbm [thread:$0]  %s1608, 512, %s6, [#allocation12]
    $region45: #{tpu_custom_call.1} parent=1 // pred_fallthru
      _
    // Predicated region
    $region46: #{tpu_custom_call.1} parent=1 // pred_check
      _
    $region47: #{tpu_custom_call.1} parent=1 // pred_check_branch
      %1612 = sbr.rel (0) target = $region49
    $region48: #{tpu_custom_call.1} parent=1 // pred_region
      %1613 = dma.done [#allocation4], 32
    $region49: #{tpu_custom_call.1} parent=1 // pred_fallthru
      _
    // Predicated region
    $region50: #{tpu_custom_call.1} parent=1 // pred_check
      _
    $region51: #{tpu_custom_call.1} parent=1 // pred_check_branch
      %1615 = sbr.rel (0) target = $region53
    $region52: #{tpu_custom_call.1} parent=1 // pred_region
      %1616 = dma.done [#allocation12], 512
    $region53: #{tpu_custom_call.1} parent=1 // pred_fallthru
      _
    %1617 = vsyncpa [#allocation3], 1
    %1618 = vsyncpa [#allocation6], 1
    %1619 = vsyncpa [#allocation9], 1
    %1620 = vsyncpa [#allocation4], 1
    %1621 = vsyncpa [#allocation12], 1

</llo_original>
